<compile_context>
chip_gen: v7x
topology: tpu7x:2x2x1
jax: 0.10.0
libtpu: 0.0.40
codegen_flags: <defaults>
</compile_context>

<pallas_src>
import jax
import jax.numpy as jnp
from jax import lax
from jax.experimental import pallas as pl
from jax.experimental.pallas import tpu as pltpu


def make_char_bilstm_kernel(T, Bb, H, Vp, E):
    """Kernel over one batch block of Bb words, T chars each (T, Bb static)."""
    G = 4 * H  # gate width per direction

    def kernel(ids_ref, len_ref, table_ref, wx_ref, b_ref, wh_ref, out_ref):
        # ids_ref : [T*Bb, 1] int32 (row = t*Bb + b), len_ref: [Bb, 1] int32
        # table_ref: [Vp, E], wx_ref: [E, 8H], b_ref: [1, 8H], wh_ref: [2, H, 4H]
        ids = ids_ref[...]
        lens = len_ref[...]

        # ---- Fused embedding lookup: exact one-hot selection on the MXU. ----
        vocab_iota = lax.broadcasted_iota(jnp.int32, (T * Bb, Vp), 1)
        onehot = (vocab_iota == ids).astype(jnp.float32)                   # [T*Bb, Vp]
        emb = jnp.dot(onehot, table_ref[...],
                      preferred_element_type=jnp.float32)                  # [T*Bb, E]

        # ---- Hoisted input projection for both directions, biases folded. ----
        xp = jnp.dot(emb, wx_ref[...],
                     preferred_element_type=jnp.float32) + b_ref[...]      # [T*Bb, 8H]

        wh_f = wh_ref[0]                                                    # [H, 4H]
        wh_b = wh_ref[1]

        h_f = jnp.zeros((Bb, H), jnp.float32)
        c_f = jnp.zeros((Bb, H), jnp.float32)
        h_b = jnp.zeros((Bb, H), jnp.float32)
        c_b = jnp.zeros((Bb, H), jnp.float32)

        def cell(x, h, c, wh, valid):
            # x, h, c: [Bb, *]; gate order (i, f, o, g) -> one sigmoid slab, one tanh slab
            gates = x + jnp.dot(h, wh, preferred_element_type=jnp.float32)  # [Bb, 4H]
            sig = jax.nn.sigmoid(gates[:, 0:3 * H])
            i_g = sig[:, 0:H]
            f_g = sig[:, H:2 * H]
            o_g = sig[:, 2 * H:3 * H]
            g_g = jnp.tanh(gates[:, 3 * H:4 * H])
            c_new = f_g * c + i_g * g_g
            h_new = o_g * jnp.tanh(c_new)
            # packed-sequence semantics: only advance state on real tokens
            h = jnp.where(valid, h_new, h)
            c = jnp.where(valid, c_new, c)
            return h, c

        # Fully unrolled time loop (T static & small for char sequences); fwd step t
        # and bwd step T-1-t are traced in the same iteration so their independent
        # MXU/EUP/VPU work overlaps.  All slice starts are static & tile aligned.
        for t in range(T):
            tb = T - 1 - t
            h_f, c_f = cell(xp[t * Bb:(t + 1) * Bb, 0:G], h_f, c_f, wh_f, lens > t)
            h_b, c_b = cell(xp[tb * Bb:(tb + 1) * Bb, G:2 * G], h_b, c_b, wh_b, lens > tb)

        # concat(h_fwd_final, h_bwd_final), single dense store of the full out tile
        out_ref[...] = jnp.concatenate([h_f, h_b], axis=-1)                 # [Bb, 2H]

    return kernel


def character_encoder_forward(char_ids, lengths, kp, *, b_block=8):
    """char_ids: [B, T] int32 (padded with the padding idx); lengths: [B] int32."""
    B, T = char_ids.shape
    Vp, E = kp["table"].shape        # padded vocab
    H = kp["wh"].shape[1]

    nblk = -(-B // b_block)
    B_pad = nblk * b_block

    ids = jnp.full((B_pad, T), kp["pad_id"], jnp.int32)
    ids = ids.at[:B].set(char_ids.astype(jnp.int32))
    lens = jnp.zeros((B_pad,), jnp.int32).at[:B].set(lengths.astype(jnp.int32))

    # Group by batch block, time-major inside each block: row = t*b_block + b.
    ids_blk = jnp.transpose(ids.reshape(nblk, b_block, T), (0, 2, 1))
    ids_blk = ids_blk.reshape(nblk, T * b_block, 1)
    len_blk = lens.reshape(nblk, b_block, 1)

    kernel = make_char_bilstm_kernel(T, b_block, H, Vp, E)

    out = pl.pallas_call(
        kernel,
        out_shape=jax.ShapeDtypeStruct((B_pad, 2 * H), jnp.float32),
        grid=(nblk,),
        in_specs=[
            pl.BlockSpec((None, T * b_block, 1), lambda i: (i, 0, 0)),   # char ids
            pl.BlockSpec((None, b_block, 1), lambda i: (i, 0, 0)),       # lengths
            pl.BlockSpec((Vp, E), lambda i: (0, 0)),                     # char table
            pl.BlockSpec((E, 8 * H), lambda i: (0, 0)),                  # W_ih (both dirs)
            pl.BlockSpec((1, 8 * H), lambda i: (0, 0)),                  # summed biases
            pl.BlockSpec((2, H, 4 * H), lambda i: (0, 0, 0)),            # W_hh stacked
        ],
        out_specs=pl.BlockSpec((b_block, 2 * H), lambda i: (i, 0)),
        compiler_params=pltpu.CompilerParams(
            dimension_semantics=("parallel",)),
    )(ids_blk, len_blk, kp["table"], kp["wx"], kp["b"], kp["wh"])
    return out[:B]


def init_params(key, voc_size, emb_dim, lstm_dim):
    """PyTorch-layout params mimicking CharacterEncoder.initialize_parameters."""
    keys = jax.random.split(key, 5)
    emb = jax.random.uniform(keys[0], (voc_size + 1, emb_dim),
                             minval=-0.01, maxval=0.01)
    emb = emb.at[voc_size].set(0.0)  # padding_idx row

    def xavier(k, shape):  # torch layout [fan_out, fan_in]
        fan_out, fan_in = shape
        a = (6.0 / (fan_in + fan_out)) ** 0.5
        return jax.random.uniform(k, shape, minval=-a, maxval=a)

    H, E = lstm_dim, emb_dim
    # torch gate order (i, f, g, o); forget-gate bias = 1 in BOTH bias_ih and bias_hh
    bias = jnp.concatenate([jnp.zeros(H), jnp.ones(H), jnp.zeros(2 * H)])
    f32 = jnp.float32
    return dict(
        emb=emb.astype(f32),
        w_ih_f=xavier(keys[1], (4 * H, E)).astype(f32),
        w_hh_f=xavier(keys[2], (4 * H, H)).astype(f32),
        w_ih_b=xavier(keys[3], (4 * H, E)).astype(f32),
        w_hh_b=xavier(keys[4], (4 * H, H)).astype(f32),
        b_ih_f=bias.astype(f32), b_hh_f=bias.astype(f32),
        b_ih_b=bias.astype(f32), b_hh_b=bias.astype(f32),
    )


def prepare_kernel_params(params):
    """Reorder gates (i,f,g,o)->(i,f,o,g), transpose, combine dirs, pad table."""
    H = params["w_hh_f"].shape[1]

    def reorder(w):  # along the 4H gate axis (dim 0)
        return jnp.concatenate([w[0:H], w[H:2 * H], w[3 * H:4 * H], w[2 * H:3 * H]],
                               axis=0)

    wx = jnp.concatenate([reorder(params["w_ih_f"]).T,
                          reorder(params["w_ih_b"]).T], axis=1)          # [E, 8H]
    wh = jnp.stack([reorder(params["w_hh_f"]).T,
                    reorder(params["w_hh_b"]).T], axis=0)                # [2, H, 4H]
    b = jnp.concatenate([reorder(params["b_ih_f"] + params["b_hh_f"]),
                         reorder(params["b_ih_b"] + params["b_hh_b"])])[None, :]

    table = params["emb"]
    Vp = table.shape[0]
    Vp_pad = -(-Vp // 8) * 8
    table = jnp.pad(table, ((0, Vp_pad - Vp), (0, 0)))
    return dict(table=table.astype(jnp.float32), wx=wx.astype(jnp.float32),
                b=b.astype(jnp.float32), wh=wh.astype(jnp.float32),
                pad_id=params["emb"].shape[0] - 1)


def reference_forward(char_ids, lengths, params):
    """Pure-JAX reference (PyTorch weight layout, gate order i,f,g,o)."""
    emb = params["emb"][char_ids].astype(jnp.float32)          # [B, T, E]
    B, T, _ = emb.shape
    H = params["w_hh_f"].shape[1]

    def run(w_ih, w_hh, b, times):
        def step(carry, t):
            h, c = carry
            x_t = emb[:, t, :]
            m = (t < lengths)[:, None]
            gates = x_t @ w_ih.T + h @ w_hh.T + b
            i = jax.nn.sigmoid(gates[:, 0:H])
            f = jax.nn.sigmoid(gates[:, H:2 * H])
            g = jnp.tanh(gates[:, 2 * H:3 * H])
            o = jax.nn.sigmoid(gates[:, 3 * H:4 * H])
            c_new = f * c + i * g
            h_new = o * jnp.tanh(c_new)
            h = jnp.where(m, h_new, h)
            c = jnp.where(m, c_new, c)
            return (h, c), None
        init = (jnp.zeros((B, H), jnp.float32), jnp.zeros((B, H), jnp.float32))
        (h, _), _ = lax.scan(step, init, times)
        return h

    h_f = run(params["w_ih_f"], params["w_hh_f"],
              params["b_ih_f"] + params["b_hh_f"], jnp.arange(T))
    h_b = run(params["w_ih_b"], params["w_hh_b"],
              params["b_ih_b"] + params["b_hh_b"], jnp.arange(T)[::-1])
    return jnp.concatenate([h_f, h_b], axis=-1)


if __name__ == "__main__":
    voc_size, emb_dim, lstm_dim = 20, 16, 32
    B, T = 12, 8   # 12 words (-> 2 batch blocks of 8 after padding), 8 chars each

    params = init_params(jax.random.PRNGKey(0), voc_size, emb_dim, lstm_dim)
    kparams = prepare_kernel_params(params)

    # Variable-length character sequences, padded with the module's padding_idx.
    lengths = jnp.array([8, 5, 3, 6, 1, 8, 7, 2, 4, 8, 6, 5], dtype=jnp.int32)
    raw = jax.random.randint(jax.random.PRNGKey(1), (B, T), 0, voc_size)
    pad_mask = jnp.arange(T)[None, :] < lengths[:, None]
    char_ids = jnp.where(pad_mask, raw, voc_size).astype(jnp.int32)

    out = character_encoder_forward(char_ids, lengths, kparams)
    out = jax.block_until_ready(out)

    ref = reference_forward(char_ids, lengths, params)
    assert out.shape == (B, 2 * lstm_dim)
    if not jnp.allclose(out, ref, atol=1e-3, rtol=1e-3):
        raise AssertionError("Pallas kernel does not match reference")
    # TODO(synk): IndependentDropout with p>0 (training mode) is not implemented;
    # eval / p=0 is the identity, which is what the forward pass here models.
    print("KERNEL_OK")
</pallas_src>

<mosaic_0001>
module attributes {stable_mosaic.version = 11 : i64} {
  func.func @kernel(%arg0: i32, %arg1: memref<1x64x1xi32, #tpu.memory_space<vmem>>, %arg2: memref<1x8x1xi32, #tpu.memory_space<vmem>>, %arg3: memref<24x16xf32, #tpu.memory_space<vmem>>, %arg4: memref<16x256xf32, #tpu.memory_space<vmem>>, %arg5: memref<1x256xf32, #tpu.memory_space<vmem>>, %arg6: memref<2x32x128xf32, #tpu.memory_space<vmem>>, %arg7: memref<8x64xf32, #tpu.memory_space<vmem>>) attributes {dimension_semantics = [#tpu.dimension_semantics<parallel>], iteration_bounds = array<i64: 2>, scalar_prefetch = 0 : i64, scratch_operands = 0 : i64, tpu.core_type = #tpu.core_type<tc>, window_params = [{transform_indices = @transform_0, window_bounds = array<i64: 1, 64, 1>}, {transform_indices = @transform_1, window_bounds = array<i64: 1, 8, 1>}, {pipeline_mode = #tpu.pipeline_mode<synchronous>, transform_indices = @transform_2, window_bounds = array<i64: 24, 16>}, {pipeline_mode = #tpu.pipeline_mode<synchronous>, transform_indices = @transform_3, window_bounds = array<i64: 16, 256>}, {pipeline_mode = #tpu.pipeline_mode<synchronous>, transform_indices = @transform_4, window_bounds = array<i64: 1, 256>}, {pipeline_mode = #tpu.pipeline_mode<synchronous>, transform_indices = @transform_5, window_bounds = array<i64: 2, 32, 128>}, {transform_indices = @transform_6, window_bounds = array<i64: 8, 64>}]} {
    %c0 = arith.constant 0 : index
    %c0_0 = arith.constant 0 : index
    %c0_1 = arith.constant 0 : index
    %0 = vector.load %arg1[%c0, %c0_0, %c0_1] : memref<1x64x1xi32, #tpu.memory_space<vmem>>, vector<1x64x1xi32>
    %1 = vector.shape_cast %0 : vector<1x64x1xi32> to vector<64x1xi32>
    %c0_2 = arith.constant 0 : index
    %c0_3 = arith.constant 0 : index
    %c0_4 = arith.constant 0 : index
    %2 = vector.load %arg2[%c0_2, %c0_3, %c0_4] : memref<1x8x1xi32, #tpu.memory_space<vmem>>, vector<1x8x1xi32>
    %3 = vector.shape_cast %2 : vector<1x8x1xi32> to vector<8x1xi32>
    %4 = tpu.iota {dimensions = array<i32: 1>} : vector<64x24xi32>
    %5 = vector.broadcast %1 : vector<64x1xi32> to vector<64x24xi32>
    %6 = arith.cmpi eq, %4, %5 : vector<64x24xi32>
    %7 = arith.extui %6 : vector<64x24xi1> to vector<64x24xi32>
    %8 = arith.sitofp %7 : vector<64x24xi32> to vector<64x24xf32>
    %c0_5 = arith.constant 0 : index
    %c0_6 = arith.constant 0 : index
    %9 = vector.load %arg3[%c0_5, %c0_6] : memref<24x16xf32, #tpu.memory_space<vmem>>, vector<24x16xf32>
    %cst = arith.constant dense<0.000000e+00> : vector<64x16xf32>
    %10 = tpu.matmul %8, %9, %cst {dimension_numbers = #tpu.dot_dimension_numbers<[1], [0], [0], [1], [0, 0, 1, 1], [], []>} : vector<64x24xf32>, vector<24x16xf32>, vector<64x16xf32> -> vector<64x16xf32>
    %c0_7 = arith.constant 0 : index
    %c0_8 = arith.constant 0 : index
    %11 = vector.load %arg4[%c0_7, %c0_8] : memref<16x256xf32, #tpu.memory_space<vmem>>, vector<16x256xf32>
    %cst_9 = arith.constant dense<0.000000e+00> : vector<64x256xf32>
    %12 = tpu.matmul %10, %11, %cst_9 {dimension_numbers = #tpu.dot_dimension_numbers<[1], [0], [0], [1], [0, 0, 1, 1], [], []>} : vector<64x16xf32>, vector<16x256xf32>, vector<64x256xf32> -> vector<64x256xf32>
    %c0_10 = arith.constant 0 : index
    %c0_11 = arith.constant 0 : index
    %13 = vector.load %arg5[%c0_10, %c0_11] : memref<1x256xf32, #tpu.memory_space<vmem>>, vector<1x256xf32>
    %14 = vector.broadcast %13 : vector<1x256xf32> to vector<64x256xf32>
    %15 = arith.addf %12, %14 : vector<64x256xf32>
    %c0_12 = arith.constant 0 : index
    %c0_13 = arith.constant 0 : index
    %c0_14 = arith.constant 0 : index
    %16 = vector.load %arg6[%c0_12, %c0_13, %c0_14] : memref<2x32x128xf32, #tpu.memory_space<vmem>>, vector<1x32x128xf32>
    %17 = vector.shape_cast %16 : vector<1x32x128xf32> to vector<32x128xf32>
    %c1 = arith.constant 1 : index
    %c0_15 = arith.constant 0 : index
    %c0_16 = arith.constant 0 : index
    %18 = vector.load %arg6[%c1, %c0_15, %c0_16] : memref<2x32x128xf32, #tpu.memory_space<vmem>>, vector<1x32x128xf32>
    %19 = vector.shape_cast %18 : vector<1x32x128xf32> to vector<32x128xf32>
    %cst_17 = arith.constant 0.000000e+00 : f32
    %20 = vector.broadcast %cst_17 : f32 to vector<8x32xf32>
    %cst_18 = arith.constant 0.000000e+00 : f32
    %21 = vector.broadcast %cst_18 : f32 to vector<8x32xf32>
    %cst_19 = arith.constant 0.000000e+00 : f32
    %22 = vector.broadcast %cst_19 : f32 to vector<8x32xf32>
    %cst_20 = arith.constant 0.000000e+00 : f32
    %23 = vector.broadcast %cst_20 : f32 to vector<8x32xf32>
    %24 = vector.extract_strided_slice %15 {offsets = [0, 0], sizes = [8, 128], strides = [1, 1]} : vector<64x256xf32> to vector<8x128xf32>
    %c0_i32 = arith.constant 0 : i32
    %25 = vector.broadcast %c0_i32 : i32 to vector<8x1xi32>
    %26 = arith.cmpi sgt, %3, %25 : vector<8x1xi32>
    %cst_21 = arith.constant dense<0.000000e+00> : vector<8x128xf32>
    %27 = tpu.matmul %20, %17, %cst_21 {dimension_numbers = #tpu.dot_dimension_numbers<[1], [0], [0], [1], [0, 0, 1, 1], [], []>} : vector<8x32xf32>, vector<32x128xf32>, vector<8x128xf32> -> vector<8x128xf32>
    %28 = arith.addf %24, %27 : vector<8x128xf32>
    %29 = vector.extract_strided_slice %28 {offsets = [0, 0], sizes = [8, 96], strides = [1, 1]} : vector<8x128xf32> to vector<8x96xf32>
    %30 = arith.negf %29 : vector<8x96xf32>
    %31 = math.exp %30 : vector<8x96xf32>
    %cst_22 = arith.constant 1.000000e+00 : f32
    %32 = vector.broadcast %cst_22 : f32 to vector<8x96xf32>
    %33 = arith.addf %32, %31 : vector<8x96xf32>
    %34 = arith.divf %32, %33 : vector<8x96xf32>
    %35 = vector.extract_strided_slice %34 {offsets = [0, 0], sizes = [8, 32], strides = [1, 1]} : vector<8x96xf32> to vector<8x32xf32>
    %36 = vector.extract_strided_slice %34 {offsets = [0, 32], sizes = [8, 32], strides = [1, 1]} : vector<8x96xf32> to vector<8x32xf32>
    %37 = vector.extract_strided_slice %34 {offsets = [0, 64], sizes = [8, 32], strides = [1, 1]} : vector<8x96xf32> to vector<8x32xf32>
    %38 = vector.extract_strided_slice %28 {offsets = [0, 96], sizes = [8, 32], strides = [1, 1]} : vector<8x128xf32> to vector<8x32xf32>
    %39 = math.tanh %38 : vector<8x32xf32>
    %40 = arith.mulf %36, %21 : vector<8x32xf32>
    %41 = arith.mulf %35, %39 : vector<8x32xf32>
    %42 = arith.addf %40, %41 : vector<8x32xf32>
    %43 = math.tanh %42 : vector<8x32xf32>
    %44 = arith.mulf %37, %43 : vector<8x32xf32>
    %45 = vector.shape_cast %26 : vector<8x1xi1> to vector<8x1xi1>
    %46 = vector.broadcast %45 : vector<8x1xi1> to vector<8x32xi1>
    %47 = arith.select %46, %44, %20 : vector<8x32xi1>, vector<8x32xf32>
    %48 = vector.shape_cast %26 : vector<8x1xi1> to vector<8x1xi1>
    %49 = vector.broadcast %48 : vector<8x1xi1> to vector<8x32xi1>
    %50 = arith.select %49, %42, %21 : vector<8x32xi1>, vector<8x32xf32>
    %51 = vector.extract_strided_slice %15 {offsets = [56, 128], sizes = [8, 128], strides = [1, 1]} : vector<64x256xf32> to vector<8x128xf32>
    %c7_i32 = arith.constant 7 : i32
    %52 = vector.broadcast %c7_i32 : i32 to vector<8x1xi32>
    %53 = arith.cmpi sgt, %3, %52 : vector<8x1xi32>
    %cst_23 = arith.constant dense<0.000000e+00> : vector<8x128xf32>
    %54 = tpu.matmul %22, %19, %cst_23 {dimension_numbers = #tpu.dot_dimension_numbers<[1], [0], [0], [1], [0, 0, 1, 1], [], []>} : vector<8x32xf32>, vector<32x128xf32>, vector<8x128xf32> -> vector<8x128xf32>
    %55 = arith.addf %51, %54 : vector<8x128xf32>
    %56 = vector.extract_strided_slice %55 {offsets = [0, 0], sizes = [8, 96], strides = [1, 1]} : vector<8x128xf32> to vector<8x96xf32>
    %57 = arith.negf %56 : vector<8x96xf32>
    %58 = math.exp %57 : vector<8x96xf32>
    %cst_24 = arith.constant 1.000000e+00 : f32
    %59 = vector.broadcast %cst_24 : f32 to vector<8x96xf32>
    %60 = arith.addf %59, %58 : vector<8x96xf32>
    %61 = arith.divf %59, %60 : vector<8x96xf32>
    %62 = vector.extract_strided_slice %61 {offsets = [0, 0], sizes = [8, 32], strides = [1, 1]} : vector<8x96xf32> to vector<8x32xf32>
    %63 = vector.extract_strided_slice %61 {offsets = [0, 32], sizes = [8, 32], strides = [1, 1]} : vector<8x96xf32> to vector<8x32xf32>
    %64 = vector.extract_strided_slice %61 {offsets = [0, 64], sizes = [8, 32], strides = [1, 1]} : vector<8x96xf32> to vector<8x32xf32>
    %65 = vector.extract_strided_slice %55 {offsets = [0, 96], sizes = [8, 32], strides = [1, 1]} : vector<8x128xf32> to vector<8x32xf32>
    %66 = math.tanh %65 : vector<8x32xf32>
    %67 = arith.mulf %63, %23 : vector<8x32xf32>
    %68 = arith.mulf %62, %66 : vector<8x32xf32>
    %69 = arith.addf %67, %68 : vector<8x32xf32>
    %70 = math.tanh %69 : vector<8x32xf32>
    %71 = arith.mulf %64, %70 : vector<8x32xf32>
    %72 = vector.shape_cast %53 : vector<8x1xi1> to vector<8x1xi1>
    %73 = vector.broadcast %72 : vector<8x1xi1> to vector<8x32xi1>
    %74 = arith.select %73, %71, %22 : vector<8x32xi1>, vector<8x32xf32>
    %75 = vector.shape_cast %53 : vector<8x1xi1> to vector<8x1xi1>
    %76 = vector.broadcast %75 : vector<8x1xi1> to vector<8x32xi1>
    %77 = arith.select %76, %69, %23 : vector<8x32xi1>, vector<8x32xf32>
    %78 = vector.extract_strided_slice %15 {offsets = [8, 0], sizes = [8, 128], strides = [1, 1]} : vector<64x256xf32> to vector<8x128xf32>
    %c1_i32 = arith.constant 1 : i32
    %79 = vector.broadcast %c1_i32 : i32 to vector<8x1xi32>
    %80 = arith.cmpi sgt, %3, %79 : vector<8x1xi32>
    %cst_25 = arith.constant dense<0.000000e+00> : vector<8x128xf32>
    %81 = tpu.matmul %47, %17, %cst_25 {dimension_numbers = #tpu.dot_dimension_numbers<[1], [0], [0], [1], [0, 0, 1, 1], [], []>} : vector<8x32xf32>, vector<32x128xf32>, vector<8x128xf32> -> vector<8x128xf32>
    %82 = arith.addf %78, %81 : vector<8x128xf32>
    %83 = vector.extract_strided_slice %82 {offsets = [0, 0], sizes = [8, 96], strides = [1, 1]} : vector<8x128xf32> to vector<8x96xf32>
    %84 = arith.negf %83 : vector<8x96xf32>
    %85 = math.exp %84 : vector<8x96xf32>
    %cst_26 = arith.constant 1.000000e+00 : f32
    %86 = vector.broadcast %cst_26 : f32 to vector<8x96xf32>
    %87 = arith.addf %86, %85 : vector<8x96xf32>
    %88 = arith.divf %86, %87 : vector<8x96xf32>
    %89 = vector.extract_strided_slice %88 {offsets = [0, 0], sizes = [8, 32], strides = [1, 1]} : vector<8x96xf32> to vector<8x32xf32>
    %90 = vector.extract_strided_slice %88 {offsets = [0, 32], sizes = [8, 32], strides = [1, 1]} : vector<8x96xf32> to vector<8x32xf32>
    %91 = vector.extract_strided_slice %88 {offsets = [0, 64], sizes = [8, 32], strides = [1, 1]} : vector<8x96xf32> to vector<8x32xf32>
    %92 = vector.extract_strided_slice %82 {offsets = [0, 96], sizes = [8, 32], strides = [1, 1]} : vector<8x128xf32> to vector<8x32xf32>
    %93 = math.tanh %92 : vector<8x32xf32>
    %94 = arith.mulf %90, %50 : vector<8x32xf32>
    %95 = arith.mulf %89, %93 : vector<8x32xf32>
    %96 = arith.addf %94, %95 : vector<8x32xf32>
    %97 = math.tanh %96 : vector<8x32xf32>
    %98 = arith.mulf %91, %97 : vector<8x32xf32>
    %99 = vector.shape_cast %80 : vector<8x1xi1> to vector<8x1xi1>
    %100 = vector.broadcast %99 : vector<8x1xi1> to vector<8x32xi1>
    %101 = arith.select %100, %98, %47 : vector<8x32xi1>, vector<8x32xf32>
    %102 = vector.shape_cast %80 : vector<8x1xi1> to vector<8x1xi1>
    %103 = vector.broadcast %102 : vector<8x1xi1> to vector<8x32xi1>
    %104 = arith.select %103, %96, %50 : vector<8x32xi1>, vector<8x32xf32>
    %105 = vector.extract_strided_slice %15 {offsets = [48, 128], sizes = [8, 128], strides = [1, 1]} : vector<64x256xf32> to vector<8x128xf32>
    %c6_i32 = arith.constant 6 : i32
    %106 = vector.broadcast %c6_i32 : i32 to vector<8x1xi32>
    %107 = arith.cmpi sgt, %3, %106 : vector<8x1xi32>
    %cst_27 = arith.constant dense<0.000000e+00> : vector<8x128xf32>
    %108 = tpu.matmul %74, %19, %cst_27 {dimension_numbers = #tpu.dot_dimension_numbers<[1], [0], [0], [1], [0, 0, 1, 1], [], []>} : vector<8x32xf32>, vector<32x128xf32>, vector<8x128xf32> -> vector<8x128xf32>
    %109 = arith.addf %105, %108 : vector<8x128xf32>
    %110 = vector.extract_strided_slice %109 {offsets = [0, 0], sizes = [8, 96], strides = [1, 1]} : vector<8x128xf32> to vector<8x96xf32>
    %111 = arith.negf %110 : vector<8x96xf32>
    %112 = math.exp %111 : vector<8x96xf32>
    %cst_28 = arith.constant 1.000000e+00 : f32
    %113 = vector.broadcast %cst_28 : f32 to vector<8x96xf32>
    %114 = arith.addf %113, %112 : vector<8x96xf32>
    %115 = arith.divf %113, %114 : vector<8x96xf32>
    %116 = vector.extract_strided_slice %115 {offsets = [0, 0], sizes = [8, 32], strides = [1, 1]} : vector<8x96xf32> to vector<8x32xf32>
    %117 = vector.extract_strided_slice %115 {offsets = [0, 32], sizes = [8, 32], strides = [1, 1]} : vector<8x96xf32> to vector<8x32xf32>
    %118 = vector.extract_strided_slice %115 {offsets = [0, 64], sizes = [8, 32], strides = [1, 1]} : vector<8x96xf32> to vector<8x32xf32>
    %119 = vector.extract_strided_slice %109 {offsets = [0, 96], sizes = [8, 32], strides = [1, 1]} : vector<8x128xf32> to vector<8x32xf32>
    %120 = math.tanh %119 : vector<8x32xf32>
    %121 = arith.mulf %117, %77 : vector<8x32xf32>
    %122 = arith.mulf %116, %120 : vector<8x32xf32>
    %123 = arith.addf %121, %122 : vector<8x32xf32>
    %124 = math.tanh %123 : vector<8x32xf32>
    %125 = arith.mulf %118, %124 : vector<8x32xf32>
    %126 = vector.shape_cast %107 : vector<8x1xi1> to vector<8x1xi1>
    %127 = vector.broadcast %126 : vector<8x1xi1> to vector<8x32xi1>
    %128 = arith.select %127, %125, %74 : vector<8x32xi1>, vector<8x32xf32>
    %129 = vector.shape_cast %107 : vector<8x1xi1> to vector<8x1xi1>
    %130 = vector.broadcast %129 : vector<8x1xi1> to vector<8x32xi1>
    %131 = arith.select %130, %123, %77 : vector<8x32xi1>, vector<8x32xf32>
    %132 = vector.extract_strided_slice %15 {offsets = [16, 0], sizes = [8, 128], strides = [1, 1]} : vector<64x256xf32> to vector<8x128xf32>
    %c2_i32 = arith.constant 2 : i32
    %133 = vector.broadcast %c2_i32 : i32 to vector<8x1xi32>
    %134 = arith.cmpi sgt, %3, %133 : vector<8x1xi32>
    %cst_29 = arith.constant dense<0.000000e+00> : vector<8x128xf32>
    %135 = tpu.matmul %101, %17, %cst_29 {dimension_numbers = #tpu.dot_dimension_numbers<[1], [0], [0], [1], [0, 0, 1, 1], [], []>} : vector<8x32xf32>, vector<32x128xf32>, vector<8x128xf32> -> vector<8x128xf32>
    %136 = arith.addf %132, %135 : vector<8x128xf32>
    %137 = vector.extract_strided_slice %136 {offsets = [0, 0], sizes = [8, 96], strides = [1, 1]} : vector<8x128xf32> to vector<8x96xf32>
    %138 = arith.negf %137 : vector<8x96xf32>
    %139 = math.exp %138 : vector<8x96xf32>
    %cst_30 = arith.constant 1.000000e+00 : f32
    %140 = vector.broadcast %cst_30 : f32 to vector<8x96xf32>
    %141 = arith.addf %140, %139 : vector<8x96xf32>
    %142 = arith.divf %140, %141 : vector<8x96xf32>
    %143 = vector.extract_strided_slice %142 {offsets = [0, 0], sizes = [8, 32], strides = [1, 1]} : vector<8x96xf32> to vector<8x32xf32>
    %144 = vector.extract_strided_slice %142 {offsets = [0, 32], sizes = [8, 32], strides = [1, 1]} : vector<8x96xf32> to vector<8x32xf32>
    %145 = vector.extract_strided_slice %142 {offsets = [0, 64], sizes = [8, 32], strides = [1, 1]} : vector<8x96xf32> to vector<8x32xf32>
    %146 = vector.extract_strided_slice %136 {offsets = [0, 96], sizes = [8, 32], strides = [1, 1]} : vector<8x128xf32> to vector<8x32xf32>
    %147 = math.tanh %146 : vector<8x32xf32>
    %148 = arith.mulf %144, %104 : vector<8x32xf32>
    %149 = arith.mulf %143, %147 : vector<8x32xf32>
    %150 = arith.addf %148, %149 : vector<8x32xf32>
    %151 = math.tanh %150 : vector<8x32xf32>
    %152 = arith.mulf %145, %151 : vector<8x32xf32>
    %153 = vector.shape_cast %134 : vector<8x1xi1> to vector<8x1xi1>
    %154 = vector.broadcast %153 : vector<8x1xi1> to vector<8x32xi1>
    %155 = arith.select %154, %152, %101 : vector<8x32xi1>, vector<8x32xf32>
    %156 = vector.shape_cast %134 : vector<8x1xi1> to vector<8x1xi1>
    %157 = vector.broadcast %156 : vector<8x1xi1> to vector<8x32xi1>
    %158 = arith.select %157, %150, %104 : vector<8x32xi1>, vector<8x32xf32>
    %159 = vector.extract_strided_slice %15 {offsets = [40, 128], sizes = [8, 128], strides = [1, 1]} : vector<64x256xf32> to vector<8x128xf32>
    %c5_i32 = arith.constant 5 : i32
    %160 = vector.broadcast %c5_i32 : i32 to vector<8x1xi32>
    %161 = arith.cmpi sgt, %3, %160 : vector<8x1xi32>
    %cst_31 = arith.constant dense<0.000000e+00> : vector<8x128xf32>
    %162 = tpu.matmul %128, %19, %cst_31 {dimension_numbers = #tpu.dot_dimension_numbers<[1], [0], [0], [1], [0, 0, 1, 1], [], []>} : vector<8x32xf32>, vector<32x128xf32>, vector<8x128xf32> -> vector<8x128xf32>
    %163 = arith.addf %159, %162 : vector<8x128xf32>
    %164 = vector.extract_strided_slice %163 {offsets = [0, 0], sizes = [8, 96], strides = [1, 1]} : vector<8x128xf32> to vector<8x96xf32>
    %165 = arith.negf %164 : vector<8x96xf32>
    %166 = math.exp %165 : vector<8x96xf32>
    %cst_32 = arith.constant 1.000000e+00 : f32
    %167 = vector.broadcast %cst_32 : f32 to vector<8x96xf32>
    %168 = arith.addf %167, %166 : vector<8x96xf32>
    %169 = arith.divf %167, %168 : vector<8x96xf32>
    %170 = vector.extract_strided_slice %169 {offsets = [0, 0], sizes = [8, 32], strides = [1, 1]} : vector<8x96xf32> to vector<8x32xf32>
    %171 = vector.extract_strided_slice %169 {offsets = [0, 32], sizes = [8, 32], strides = [1, 1]} : vector<8x96xf32> to vector<8x32xf32>
    %172 = vector.extract_strided_slice %169 {offsets = [0, 64], sizes = [8, 32], strides = [1, 1]} : vector<8x96xf32> to vector<8x32xf32>
    %173 = vector.extract_strided_slice %163 {offsets = [0, 96], sizes = [8, 32], strides = [1, 1]} : vector<8x128xf32> to vector<8x32xf32>
    %174 = math.tanh %173 : vector<8x32xf32>
    %175 = arith.mulf %171, %131 : vector<8x32xf32>
    %176 = arith.mulf %170, %174 : vector<8x32xf32>
    %177 = arith.addf %175, %176 : vector<8x32xf32>
    %178 = math.tanh %177 : vector<8x32xf32>
    %179 = arith.mulf %172, %178 : vector<8x32xf32>
    %180 = vector.shape_cast %161 : vector<8x1xi1> to vector<8x1xi1>
    %181 = vector.broadcast %180 : vector<8x1xi1> to vector<8x32xi1>
    %182 = arith.select %181, %179, %128 : vector<8x32xi1>, vector<8x32xf32>
    %183 = vector.shape_cast %161 : vector<8x1xi1> to vector<8x1xi1>
    %184 = vector.broadcast %183 : vector<8x1xi1> to vector<8x32xi1>
    %185 = arith.select %184, %177, %131 : vector<8x32xi1>, vector<8x32xf32>
    %186 = vector.extract_strided_slice %15 {offsets = [24, 0], sizes = [8, 128], strides = [1, 1]} : vector<64x256xf32> to vector<8x128xf32>
    %c3_i32 = arith.constant 3 : i32
    %187 = vector.broadcast %c3_i32 : i32 to vector<8x1xi32>
    %188 = arith.cmpi sgt, %3, %187 : vector<8x1xi32>
    %cst_33 = arith.constant dense<0.000000e+00> : vector<8x128xf32>
    %189 = tpu.matmul %155, %17, %cst_33 {dimension_numbers = #tpu.dot_dimension_numbers<[1], [0], [0], [1], [0, 0, 1, 1], [], []>} : vector<8x32xf32>, vector<32x128xf32>, vector<8x128xf32> -> vector<8x128xf32>
    %190 = arith.addf %186, %189 : vector<8x128xf32>
    %191 = vector.extract_strided_slice %190 {offsets = [0, 0], sizes = [8, 96], strides = [1, 1]} : vector<8x128xf32> to vector<8x96xf32>
    %192 = arith.negf %191 : vector<8x96xf32>
    %193 = math.exp %192 : vector<8x96xf32>
    %cst_34 = arith.constant 1.000000e+00 : f32
    %194 = vector.broadcast %cst_34 : f32 to vector<8x96xf32>
    %195 = arith.addf %194, %193 : vector<8x96xf32>
    %196 = arith.divf %194, %195 : vector<8x96xf32>
    %197 = vector.extract_strided_slice %196 {offsets = [0, 0], sizes = [8, 32], strides = [1, 1]} : vector<8x96xf32> to vector<8x32xf32>
    %198 = vector.extract_strided_slice %196 {offsets = [0, 32], sizes = [8, 32], strides = [1, 1]} : vector<8x96xf32> to vector<8x32xf32>
    %199 = vector.extract_strided_slice %196 {offsets = [0, 64], sizes = [8, 32], strides = [1, 1]} : vector<8x96xf32> to vector<8x32xf32>
    %200 = vector.extract_strided_slice %190 {offsets = [0, 96], sizes = [8, 32], strides = [1, 1]} : vector<8x128xf32> to vector<8x32xf32>
    %201 = math.tanh %200 : vector<8x32xf32>
    %202 = arith.mulf %198, %158 : vector<8x32xf32>
    %203 = arith.mulf %197, %201 : vector<8x32xf32>
    %204 = arith.addf %202, %203 : vector<8x32xf32>
    %205 = math.tanh %204 : vector<8x32xf32>
    %206 = arith.mulf %199, %205 : vector<8x32xf32>
    %207 = vector.shape_cast %188 : vector<8x1xi1> to vector<8x1xi1>
    %208 = vector.broadcast %207 : vector<8x1xi1> to vector<8x32xi1>
    %209 = arith.select %208, %206, %155 : vector<8x32xi1>, vector<8x32xf32>
    %210 = vector.shape_cast %188 : vector<8x1xi1> to vector<8x1xi1>
    %211 = vector.broadcast %210 : vector<8x1xi1> to vector<8x32xi1>
    %212 = arith.select %211, %204, %158 : vector<8x32xi1>, vector<8x32xf32>
    %213 = vector.extract_strided_slice %15 {offsets = [32, 128], sizes = [8, 128], strides = [1, 1]} : vector<64x256xf32> to vector<8x128xf32>
    %c4_i32 = arith.constant 4 : i32
    %214 = vector.broadcast %c4_i32 : i32 to vector<8x1xi32>
    %215 = arith.cmpi sgt, %3, %214 : vector<8x1xi32>
    %cst_35 = arith.constant dense<0.000000e+00> : vector<8x128xf32>
    %216 = tpu.matmul %182, %19, %cst_35 {dimension_numbers = #tpu.dot_dimension_numbers<[1], [0], [0], [1], [0, 0, 1, 1], [], []>} : vector<8x32xf32>, vector<32x128xf32>, vector<8x128xf32> -> vector<8x128xf32>
    %217 = arith.addf %213, %216 : vector<8x128xf32>
    %218 = vector.extract_strided_slice %217 {offsets = [0, 0], sizes = [8, 96], strides = [1, 1]} : vector<8x128xf32> to vector<8x96xf32>
    %219 = arith.negf %218 : vector<8x96xf32>
    %220 = math.exp %219 : vector<8x96xf32>
    %cst_36 = arith.constant 1.000000e+00 : f32
    %221 = vector.broadcast %cst_36 : f32 to vector<8x96xf32>
    %222 = arith.addf %221, %220 : vector<8x96xf32>
    %223 = arith.divf %221, %222 : vector<8x96xf32>
    %224 = vector.extract_strided_slice %223 {offsets = [0, 0], sizes = [8, 32], strides = [1, 1]} : vector<8x96xf32> to vector<8x32xf32>
    %225 = vector.extract_strided_slice %223 {offsets = [0, 32], sizes = [8, 32], strides = [1, 1]} : vector<8x96xf32> to vector<8x32xf32>
    %226 = vector.extract_strided_slice %223 {offsets = [0, 64], sizes = [8, 32], strides = [1, 1]} : vector<8x96xf32> to vector<8x32xf32>
    %227 = vector.extract_strided_slice %217 {offsets = [0, 96], sizes = [8, 32], strides = [1, 1]} : vector<8x128xf32> to vector<8x32xf32>
    %228 = math.tanh %227 : vector<8x32xf32>
    %229 = arith.mulf %225, %185 : vector<8x32xf32>
    %230 = arith.mulf %224, %228 : vector<8x32xf32>
    %231 = arith.addf %229, %230 : vector<8x32xf32>
    %232 = math.tanh %231 : vector<8x32xf32>
    %233 = arith.mulf %226, %232 : vector<8x32xf32>
    %234 = vector.shape_cast %215 : vector<8x1xi1> to vector<8x1xi1>
    %235 = vector.broadcast %234 : vector<8x1xi1> to vector<8x32xi1>
    %236 = arith.select %235, %233, %182 : vector<8x32xi1>, vector<8x32xf32>
    %237 = vector.shape_cast %215 : vector<8x1xi1> to vector<8x1xi1>
    %238 = vector.broadcast %237 : vector<8x1xi1> to vector<8x32xi1>
    %239 = arith.select %238, %231, %185 : vector<8x32xi1>, vector<8x32xf32>
    %240 = vector.extract_strided_slice %15 {offsets = [32, 0], sizes = [8, 128], strides = [1, 1]} : vector<64x256xf32> to vector<8x128xf32>
    %c4_i32_37 = arith.constant 4 : i32
    %241 = vector.broadcast %c4_i32_37 : i32 to vector<8x1xi32>
    %242 = arith.cmpi sgt, %3, %241 : vector<8x1xi32>
    %cst_38 = arith.constant dense<0.000000e+00> : vector<8x128xf32>
    %243 = tpu.matmul %209, %17, %cst_38 {dimension_numbers = #tpu.dot_dimension_numbers<[1], [0], [0], [1], [0, 0, 1, 1], [], []>} : vector<8x32xf32>, vector<32x128xf32>, vector<8x128xf32> -> vector<8x128xf32>
    %244 = arith.addf %240, %243 : vector<8x128xf32>
    %245 = vector.extract_strided_slice %244 {offsets = [0, 0], sizes = [8, 96], strides = [1, 1]} : vector<8x128xf32> to vector<8x96xf32>
    %246 = arith.negf %245 : vector<8x96xf32>
    %247 = math.exp %246 : vector<8x96xf32>
    %cst_39 = arith.constant 1.000000e+00 : f32
    %248 = vector.broadcast %cst_39 : f32 to vector<8x96xf32>
    %249 = arith.addf %248, %247 : vector<8x96xf32>
    %250 = arith.divf %248, %249 : vector<8x96xf32>
    %251 = vector.extract_strided_slice %250 {offsets = [0, 0], sizes = [8, 32], strides = [1, 1]} : vector<8x96xf32> to vector<8x32xf32>
    %252 = vector.extract_strided_slice %250 {offsets = [0, 32], sizes = [8, 32], strides = [1, 1]} : vector<8x96xf32> to vector<8x32xf32>
    %253 = vector.extract_strided_slice %250 {offsets = [0, 64], sizes = [8, 32], strides = [1, 1]} : vector<8x96xf32> to vector<8x32xf32>
    %254 = vector.extract_strided_slice %244 {offsets = [0, 96], sizes = [8, 32], strides = [1, 1]} : vector<8x128xf32> to vector<8x32xf32>
    %255 = math.tanh %254 : vector<8x32xf32>
    %256 = arith.mulf %252, %212 : vector<8x32xf32>
    %257 = arith.mulf %251, %255 : vector<8x32xf32>
    %258 = arith.addf %256, %257 : vector<8x32xf32>
    %259 = math.tanh %258 : vector<8x32xf32>
    %260 = arith.mulf %253, %259 : vector<8x32xf32>
    %261 = vector.shape_cast %242 : vector<8x1xi1> to vector<8x1xi1>
    %262 = vector.broadcast %261 : vector<8x1xi1> to vector<8x32xi1>
    %263 = arith.select %262, %260, %209 : vector<8x32xi1>, vector<8x32xf32>
    %264 = vector.shape_cast %242 : vector<8x1xi1> to vector<8x1xi1>
    %265 = vector.broadcast %264 : vector<8x1xi1> to vector<8x32xi1>
    %266 = arith.select %265, %258, %212 : vector<8x32xi1>, vector<8x32xf32>
    %267 = vector.extract_strided_slice %15 {offsets = [24, 128], sizes = [8, 128], strides = [1, 1]} : vector<64x256xf32> to vector<8x128xf32>
    %c3_i32_40 = arith.constant 3 : i32
    %268 = vector.broadcast %c3_i32_40 : i32 to vector<8x1xi32>
    %269 = arith.cmpi sgt, %3, %268 : vector<8x1xi32>
    %cst_41 = arith.constant dense<0.000000e+00> : vector<8x128xf32>
    %270 = tpu.matmul %236, %19, %cst_41 {dimension_numbers = #tpu.dot_dimension_numbers<[1], [0], [0], [1], [0, 0, 1, 1], [], []>} : vector<8x32xf32>, vector<32x128xf32>, vector<8x128xf32> -> vector<8x128xf32>
    %271 = arith.addf %267, %270 : vector<8x128xf32>
    %272 = vector.extract_strided_slice %271 {offsets = [0, 0], sizes = [8, 96], strides = [1, 1]} : vector<8x128xf32> to vector<8x96xf32>
    %273 = arith.negf %272 : vector<8x96xf32>
    %274 = math.exp %273 : vector<8x96xf32>
    %cst_42 = arith.constant 1.000000e+00 : f32
    %275 = vector.broadcast %cst_42 : f32 to vector<8x96xf32>
    %276 = arith.addf %275, %274 : vector<8x96xf32>
    %277 = arith.divf %275, %276 : vector<8x96xf32>
    %278 = vector.extract_strided_slice %277 {offsets = [0, 0], sizes = [8, 32], strides = [1, 1]} : vector<8x96xf32> to vector<8x32xf32>
    %279 = vector.extract_strided_slice %277 {offsets = [0, 32], sizes = [8, 32], strides = [1, 1]} : vector<8x96xf32> to vector<8x32xf32>
    %280 = vector.extract_strided_slice %277 {offsets = [0, 64], sizes = [8, 32], strides = [1, 1]} : vector<8x96xf32> to vector<8x32xf32>
    %281 = vector.extract_strided_slice %271 {offsets = [0, 96], sizes = [8, 32], strides = [1, 1]} : vector<8x128xf32> to vector<8x32xf32>
    %282 = math.tanh %281 : vector<8x32xf32>
    %283 = arith.mulf %279, %239 : vector<8x32xf32>
    %284 = arith.mulf %278, %282 : vector<8x32xf32>
    %285 = arith.addf %283, %284 : vector<8x32xf32>
    %286 = math.tanh %285 : vector<8x32xf32>
    %287 = arith.mulf %280, %286 : vector<8x32xf32>
    %288 = vector.shape_cast %269 : vector<8x1xi1> to vector<8x1xi1>
    %289 = vector.broadcast %288 : vector<8x1xi1> to vector<8x32xi1>
    %290 = arith.select %289, %287, %236 : vector<8x32xi1>, vector<8x32xf32>
    %291 = vector.shape_cast %269 : vector<8x1xi1> to vector<8x1xi1>
    %292 = vector.broadcast %291 : vector<8x1xi1> to vector<8x32xi1>
    %293 = arith.select %292, %285, %239 : vector<8x32xi1>, vector<8x32xf32>
    %294 = vector.extract_strided_slice %15 {offsets = [40, 0], sizes = [8, 128], strides = [1, 1]} : vector<64x256xf32> to vector<8x128xf32>
    %c5_i32_43 = arith.constant 5 : i32
    %295 = vector.broadcast %c5_i32_43 : i32 to vector<8x1xi32>
    %296 = arith.cmpi sgt, %3, %295 : vector<8x1xi32>
    %cst_44 = arith.constant dense<0.000000e+00> : vector<8x128xf32>
    %297 = tpu.matmul %263, %17, %cst_44 {dimension_numbers = #tpu.dot_dimension_numbers<[1], [0], [0], [1], [0, 0, 1, 1], [], []>} : vector<8x32xf32>, vector<32x128xf32>, vector<8x128xf32> -> vector<8x128xf32>
    %298 = arith.addf %294, %297 : vector<8x128xf32>
    %299 = vector.extract_strided_slice %298 {offsets = [0, 0], sizes = [8, 96], strides = [1, 1]} : vector<8x128xf32> to vector<8x96xf32>
    %300 = arith.negf %299 : vector<8x96xf32>
    %301 = math.exp %300 : vector<8x96xf32>
    %cst_45 = arith.constant 1.000000e+00 : f32
    %302 = vector.broadcast %cst_45 : f32 to vector<8x96xf32>
    %303 = arith.addf %302, %301 : vector<8x96xf32>
    %304 = arith.divf %302, %303 : vector<8x96xf32>
    %305 = vector.extract_strided_slice %304 {offsets = [0, 0], sizes = [8, 32], strides = [1, 1]} : vector<8x96xf32> to vector<8x32xf32>
    %306 = vector.extract_strided_slice %304 {offsets = [0, 32], sizes = [8, 32], strides = [1, 1]} : vector<8x96xf32> to vector<8x32xf32>
    %307 = vector.extract_strided_slice %304 {offsets = [0, 64], sizes = [8, 32], strides = [1, 1]} : vector<8x96xf32> to vector<8x32xf32>
    %308 = vector.extract_strided_slice %298 {offsets = [0, 96], sizes = [8, 32], strides = [1, 1]} : vector<8x128xf32> to vector<8x32xf32>
    %309 = math.tanh %308 : vector<8x32xf32>
    %310 = arith.mulf %306, %266 : vector<8x32xf32>
    %311 = arith.mulf %305, %309 : vector<8x32xf32>
    %312 = arith.addf %310, %311 : vector<8x32xf32>
    %313 = math.tanh %312 : vector<8x32xf32>
    %314 = arith.mulf %307, %313 : vector<8x32xf32>
    %315 = vector.shape_cast %296 : vector<8x1xi1> to vector<8x1xi1>
    %316 = vector.broadcast %315 : vector<8x1xi1> to vector<8x32xi1>
    %317 = arith.select %316, %314, %263 : vector<8x32xi1>, vector<8x32xf32>
    %318 = vector.shape_cast %296 : vector<8x1xi1> to vector<8x1xi1>
    %319 = vector.broadcast %318 : vector<8x1xi1> to vector<8x32xi1>
    %320 = arith.select %319, %312, %266 : vector<8x32xi1>, vector<8x32xf32>
    %321 = vector.extract_strided_slice %15 {offsets = [16, 128], sizes = [8, 128], strides = [1, 1]} : vector<64x256xf32> to vector<8x128xf32>
    %c2_i32_46 = arith.constant 2 : i32
    %322 = vector.broadcast %c2_i32_46 : i32 to vector<8x1xi32>
    %323 = arith.cmpi sgt, %3, %322 : vector<8x1xi32>
    %cst_47 = arith.constant dense<0.000000e+00> : vector<8x128xf32>
    %324 = tpu.matmul %290, %19, %cst_47 {dimension_numbers = #tpu.dot_dimension_numbers<[1], [0], [0], [1], [0, 0, 1, 1], [], []>} : vector<8x32xf32>, vector<32x128xf32>, vector<8x128xf32> -> vector<8x128xf32>
    %325 = arith.addf %321, %324 : vector<8x128xf32>
    %326 = vector.extract_strided_slice %325 {offsets = [0, 0], sizes = [8, 96], strides = [1, 1]} : vector<8x128xf32> to vector<8x96xf32>
    %327 = arith.negf %326 : vector<8x96xf32>
    %328 = math.exp %327 : vector<8x96xf32>
    %cst_48 = arith.constant 1.000000e+00 : f32
    %329 = vector.broadcast %cst_48 : f32 to vector<8x96xf32>
    %330 = arith.addf %329, %328 : vector<8x96xf32>
    %331 = arith.divf %329, %330 : vector<8x96xf32>
    %332 = vector.extract_strided_slice %331 {offsets = [0, 0], sizes = [8, 32], strides = [1, 1]} : vector<8x96xf32> to vector<8x32xf32>
    %333 = vector.extract_strided_slice %331 {offsets = [0, 32], sizes = [8, 32], strides = [1, 1]} : vector<8x96xf32> to vector<8x32xf32>
    %334 = vector.extract_strided_slice %331 {offsets = [0, 64], sizes = [8, 32], strides = [1, 1]} : vector<8x96xf32> to vector<8x32xf32>
    %335 = vector.extract_strided_slice %325 {offsets = [0, 96], sizes = [8, 32], strides = [1, 1]} : vector<8x128xf32> to vector<8x32xf32>
    %336 = math.tanh %335 : vector<8x32xf32>
    %337 = arith.mulf %333, %293 : vector<8x32xf32>
    %338 = arith.mulf %332, %336 : vector<8x32xf32>
    %339 = arith.addf %337, %338 : vector<8x32xf32>
    %340 = math.tanh %339 : vector<8x32xf32>
    %341 = arith.mulf %334, %340 : vector<8x32xf32>
    %342 = vector.shape_cast %323 : vector<8x1xi1> to vector<8x1xi1>
    %343 = vector.broadcast %342 : vector<8x1xi1> to vector<8x32xi1>
    %344 = arith.select %343, %341, %290 : vector<8x32xi1>, vector<8x32xf32>
    %345 = vector.shape_cast %323 : vector<8x1xi1> to vector<8x1xi1>
    %346 = vector.broadcast %345 : vector<8x1xi1> to vector<8x32xi1>
    %347 = arith.select %346, %339, %293 : vector<8x32xi1>, vector<8x32xf32>
    %348 = vector.extract_strided_slice %15 {offsets = [48, 0], sizes = [8, 128], strides = [1, 1]} : vector<64x256xf32> to vector<8x128xf32>
    %c6_i32_49 = arith.constant 6 : i32
    %349 = vector.broadcast %c6_i32_49 : i32 to vector<8x1xi32>
    %350 = arith.cmpi sgt, %3, %349 : vector<8x1xi32>
    %cst_50 = arith.constant dense<0.000000e+00> : vector<8x128xf32>
    %351 = tpu.matmul %317, %17, %cst_50 {dimension_numbers = #tpu.dot_dimension_numbers<[1], [0], [0], [1], [0, 0, 1, 1], [], []>} : vector<8x32xf32>, vector<32x128xf32>, vector<8x128xf32> -> vector<8x128xf32>
    %352 = arith.addf %348, %351 : vector<8x128xf32>
    %353 = vector.extract_strided_slice %352 {offsets = [0, 0], sizes = [8, 96], strides = [1, 1]} : vector<8x128xf32> to vector<8x96xf32>
    %354 = arith.negf %353 : vector<8x96xf32>
    %355 = math.exp %354 : vector<8x96xf32>
    %cst_51 = arith.constant 1.000000e+00 : f32
    %356 = vector.broadcast %cst_51 : f32 to vector<8x96xf32>
    %357 = arith.addf %356, %355 : vector<8x96xf32>
    %358 = arith.divf %356, %357 : vector<8x96xf32>
    %359 = vector.extract_strided_slice %358 {offsets = [0, 0], sizes = [8, 32], strides = [1, 1]} : vector<8x96xf32> to vector<8x32xf32>
    %360 = vector.extract_strided_slice %358 {offsets = [0, 32], sizes = [8, 32], strides = [1, 1]} : vector<8x96xf32> to vector<8x32xf32>
    %361 = vector.extract_strided_slice %358 {offsets = [0, 64], sizes = [8, 32], strides = [1, 1]} : vector<8x96xf32> to vector<8x32xf32>
    %362 = vector.extract_strided_slice %352 {offsets = [0, 96], sizes = [8, 32], strides = [1, 1]} : vector<8x128xf32> to vector<8x32xf32>
    %363 = math.tanh %362 : vector<8x32xf32>
    %364 = arith.mulf %360, %320 : vector<8x32xf32>
    %365 = arith.mulf %359, %363 : vector<8x32xf32>
    %366 = arith.addf %364, %365 : vector<8x32xf32>
    %367 = math.tanh %366 : vector<8x32xf32>
    %368 = arith.mulf %361, %367 : vector<8x32xf32>
    %369 = vector.shape_cast %350 : vector<8x1xi1> to vector<8x1xi1>
    %370 = vector.broadcast %369 : vector<8x1xi1> to vector<8x32xi1>
    %371 = arith.select %370, %368, %317 : vector<8x32xi1>, vector<8x32xf32>
    %372 = vector.shape_cast %350 : vector<8x1xi1> to vector<8x1xi1>
    %373 = vector.broadcast %372 : vector<8x1xi1> to vector<8x32xi1>
    %374 = arith.select %373, %366, %320 : vector<8x32xi1>, vector<8x32xf32>
    %375 = vector.extract_strided_slice %15 {offsets = [8, 128], sizes = [8, 128], strides = [1, 1]} : vector<64x256xf32> to vector<8x128xf32>
    %c1_i32_52 = arith.constant 1 : i32
    %376 = vector.broadcast %c1_i32_52 : i32 to vector<8x1xi32>
    %377 = arith.cmpi sgt, %3, %376 : vector<8x1xi32>
    %cst_53 = arith.constant dense<0.000000e+00> : vector<8x128xf32>
    %378 = tpu.matmul %344, %19, %cst_53 {dimension_numbers = #tpu.dot_dimension_numbers<[1], [0], [0], [1], [0, 0, 1, 1], [], []>} : vector<8x32xf32>, vector<32x128xf32>, vector<8x128xf32> -> vector<8x128xf32>
    %379 = arith.addf %375, %378 : vector<8x128xf32>
    %380 = vector.extract_strided_slice %379 {offsets = [0, 0], sizes = [8, 96], strides = [1, 1]} : vector<8x128xf32> to vector<8x96xf32>
    %381 = arith.negf %380 : vector<8x96xf32>
    %382 = math.exp %381 : vector<8x96xf32>
    %cst_54 = arith.constant 1.000000e+00 : f32
    %383 = vector.broadcast %cst_54 : f32 to vector<8x96xf32>
    %384 = arith.addf %383, %382 : vector<8x96xf32>
    %385 = arith.divf %383, %384 : vector<8x96xf32>
    %386 = vector.extract_strided_slice %385 {offsets = [0, 0], sizes = [8, 32], strides = [1, 1]} : vector<8x96xf32> to vector<8x32xf32>
    %387 = vector.extract_strided_slice %385 {offsets = [0, 32], sizes = [8, 32], strides = [1, 1]} : vector<8x96xf32> to vector<8x32xf32>
    %388 = vector.extract_strided_slice %385 {offsets = [0, 64], sizes = [8, 32], strides = [1, 1]} : vector<8x96xf32> to vector<8x32xf32>
    %389 = vector.extract_strided_slice %379 {offsets = [0, 96], sizes = [8, 32], strides = [1, 1]} : vector<8x128xf32> to vector<8x32xf32>
    %390 = math.tanh %389 : vector<8x32xf32>
    %391 = arith.mulf %387, %347 : vector<8x32xf32>
    %392 = arith.mulf %386, %390 : vector<8x32xf32>
    %393 = arith.addf %391, %392 : vector<8x32xf32>
    %394 = math.tanh %393 : vector<8x32xf32>
    %395 = arith.mulf %388, %394 : vector<8x32xf32>
    %396 = vector.shape_cast %377 : vector<8x1xi1> to vector<8x1xi1>
    %397 = vector.broadcast %396 : vector<8x1xi1> to vector<8x32xi1>
    %398 = arith.select %397, %395, %344 : vector<8x32xi1>, vector<8x32xf32>
    %399 = vector.shape_cast %377 : vector<8x1xi1> to vector<8x1xi1>
    %400 = vector.broadcast %399 : vector<8x1xi1> to vector<8x32xi1>
    %401 = arith.select %400, %393, %347 : vector<8x32xi1>, vector<8x32xf32>
    %402 = vector.extract_strided_slice %15 {offsets = [56, 0], sizes = [8, 128], strides = [1, 1]} : vector<64x256xf32> to vector<8x128xf32>
    %c7_i32_55 = arith.constant 7 : i32
    %403 = vector.broadcast %c7_i32_55 : i32 to vector<8x1xi32>
    %404 = arith.cmpi sgt, %3, %403 : vector<8x1xi32>
    %cst_56 = arith.constant dense<0.000000e+00> : vector<8x128xf32>
    %405 = tpu.matmul %371, %17, %cst_56 {dimension_numbers = #tpu.dot_dimension_numbers<[1], [0], [0], [1], [0, 0, 1, 1], [], []>} : vector<8x32xf32>, vector<32x128xf32>, vector<8x128xf32> -> vector<8x128xf32>
    %406 = arith.addf %402, %405 : vector<8x128xf32>
    %407 = vector.extract_strided_slice %406 {offsets = [0, 0], sizes = [8, 96], strides = [1, 1]} : vector<8x128xf32> to vector<8x96xf32>
    %408 = arith.negf %407 : vector<8x96xf32>
    %409 = math.exp %408 : vector<8x96xf32>
    %cst_57 = arith.constant 1.000000e+00 : f32
    %410 = vector.broadcast %cst_57 : f32 to vector<8x96xf32>
    %411 = arith.addf %410, %409 : vector<8x96xf32>
    %412 = arith.divf %410, %411 : vector<8x96xf32>
    %413 = vector.extract_strided_slice %412 {offsets = [0, 0], sizes = [8, 32], strides = [1, 1]} : vector<8x96xf32> to vector<8x32xf32>
    %414 = vector.extract_strided_slice %412 {offsets = [0, 32], sizes = [8, 32], strides = [1, 1]} : vector<8x96xf32> to vector<8x32xf32>
    %415 = vector.extract_strided_slice %412 {offsets = [0, 64], sizes = [8, 32], strides = [1, 1]} : vector<8x96xf32> to vector<8x32xf32>
    %416 = vector.extract_strided_slice %406 {offsets = [0, 96], sizes = [8, 32], strides = [1, 1]} : vector<8x128xf32> to vector<8x32xf32>
    %417 = math.tanh %416 : vector<8x32xf32>
    %418 = arith.mulf %414, %374 : vector<8x32xf32>
    %419 = arith.mulf %413, %417 : vector<8x32xf32>
    %420 = arith.addf %418, %419 : vector<8x32xf32>
    %421 = math.tanh %420 : vector<8x32xf32>
    %422 = arith.mulf %415, %421 : vector<8x32xf32>
    %423 = vector.shape_cast %404 : vector<8x1xi1> to vector<8x1xi1>
    %424 = vector.broadcast %423 : vector<8x1xi1> to vector<8x32xi1>
    %425 = arith.select %424, %422, %371 : vector<8x32xi1>, vector<8x32xf32>
    %426 = vector.extract_strided_slice %15 {offsets = [0, 128], sizes = [8, 128], strides = [1, 1]} : vector<64x256xf32> to vector<8x128xf32>
    %c0_i32_58 = arith.constant 0 : i32
    %427 = vector.broadcast %c0_i32_58 : i32 to vector<8x1xi32>
    %428 = arith.cmpi sgt, %3, %427 : vector<8x1xi32>
    %cst_59 = arith.constant dense<0.000000e+00> : vector<8x128xf32>
    %429 = tpu.matmul %398, %19, %cst_59 {dimension_numbers = #tpu.dot_dimension_numbers<[1], [0], [0], [1], [0, 0, 1, 1], [], []>} : vector<8x32xf32>, vector<32x128xf32>, vector<8x128xf32> -> vector<8x128xf32>
    %430 = arith.addf %426, %429 : vector<8x128xf32>
    %431 = vector.extract_strided_slice %430 {offsets = [0, 0], sizes = [8, 96], strides = [1, 1]} : vector<8x128xf32> to vector<8x96xf32>
    %432 = arith.negf %431 : vector<8x96xf32>
    %433 = math.exp %432 : vector<8x96xf32>
    %cst_60 = arith.constant 1.000000e+00 : f32
    %434 = vector.broadcast %cst_60 : f32 to vector<8x96xf32>
    %435 = arith.addf %434, %433 : vector<8x96xf32>
    %436 = arith.divf %434, %435 : vector<8x96xf32>
    %437 = vector.extract_strided_slice %436 {offsets = [0, 0], sizes = [8, 32], strides = [1, 1]} : vector<8x96xf32> to vector<8x32xf32>
    %438 = vector.extract_strided_slice %436 {offsets = [0, 32], sizes = [8, 32], strides = [1, 1]} : vector<8x96xf32> to vector<8x32xf32>
    %439 = vector.extract_strided_slice %436 {offsets = [0, 64], sizes = [8, 32], strides = [1, 1]} : vector<8x96xf32> to vector<8x32xf32>
    %440 = vector.extract_strided_slice %430 {offsets = [0, 96], sizes = [8, 32], strides = [1, 1]} : vector<8x128xf32> to vector<8x32xf32>
    %441 = math.tanh %440 : vector<8x32xf32>
    %442 = arith.mulf %438, %401 : vector<8x32xf32>
    %443 = arith.mulf %437, %441 : vector<8x32xf32>
    %444 = arith.addf %442, %443 : vector<8x32xf32>
    %445 = math.tanh %444 : vector<8x32xf32>
    %446 = arith.mulf %439, %445 : vector<8x32xf32>
    %447 = vector.shape_cast %428 : vector<8x1xi1> to vector<8x1xi1>
    %448 = vector.broadcast %447 : vector<8x1xi1> to vector<8x32xi1>
    %449 = arith.select %448, %446, %398 : vector<8x32xi1>, vector<8x32xf32>
    %450 = tpu.concatenate %425, %449 in 1 : vector<8x32xf32>, vector<8x32xf32> -> vector<8x64xf32>
    %c0_61 = arith.constant 0 : index
    %c0_62 = arith.constant 0 : index
    %451 = vector.load %arg7[%c0_61, %c0_62] : memref<8x64xf32, #tpu.memory_space<vmem>>, vector<8x64xf32>
    tpu.vector_store %arg7[%c0_61, %c0_62], %450 {strides = array<i32>} : memref<8x64xf32, #tpu.memory_space<vmem>>, vector<8x64xf32>,
    return
  }
  func.func @transform_0(%arg0: i32) -> (i32, i32, i32) {
    %c0_i32 = arith.constant 0 : i32
    %c0_i32_0 = arith.constant 0 : i32
    %c0_i32_1 = arith.constant 0 : i32
    return %arg0, %c0_i32, %c0_i32_0 : i32, i32, i32
  }
  func.func @transform_1(%arg0: i32) -> (i32, i32, i32) {
    %c0_i32 = arith.constant 0 : i32
    %c0_i32_0 = arith.constant 0 : i32
    %c0_i32_1 = arith.constant 0 : i32
    return %arg0, %c0_i32, %c0_i32_0 : i32, i32, i32
  }
  func.func @transform_2(%arg0: i32) -> (i32, i32) {
    %c0_i32 = arith.constant 0 : i32
    %c0_i32_0 = arith.constant 0 : i32
    %c0_i32_1 = arith.constant 0 : i32
    return %c0_i32, %c0_i32_0 : i32, i32
  }
  func.func @transform_3(%arg0: i32) -> (i32, i32) {
    %c0_i32 = arith.constant 0 : i32
    %c0_i32_0 = arith.constant 0 : i32
    %c0_i32_1 = arith.constant 0 : i32
    return %c0_i32, %c0_i32_0 : i32, i32
  }
  func.func @transform_4(%arg0: i32) -> (i32, i32) {
    %c0_i32 = arith.constant 0 : i32
    %c0_i32_0 = arith.constant 0 : i32
    %c0_i32_1 = arith.constant 0 : i32
    return %c0_i32, %c0_i32_0 : i32, i32
  }
  func.func @transform_5(%arg0: i32) -> (i32, i32, i32) {
    %c0_i32 = arith.constant 0 : i32
    %c0_i32_0 = arith.constant 0 : i32
    %c0_i32_1 = arith.constant 0 : i32
    %c0_i32_2 = arith.constant 0 : i32
    return %c0_i32, %c0_i32_0, %c0_i32_1 : i32, i32, i32
  }
  func.func @transform_6(%arg0: i32) -> (i32, i32) {
    %c0_i32 = arith.constant 0 : i32
    %c0_i32_0 = arith.constant 0 : i32
    return %arg0, %c0_i32 : i32, i32
  }
}

</mosaic_0001>

<llo_original>
// kernel: tpu_custom_call.1
$region0: #{tpu_custom_call.1}
  #allocation0 [shape = 'u32[]', space=smem, size = 0x4, offset = 0x4, fixed_abs, tag = 'smem constant byte address 0x4 - core index']
  #allocation1 [shape = 'u32[144,128]{1,0:T(1,128)}', space=vmem, size = 0x12000, scoped, tag = 'internal scratch']
  %s0 = inlined_call_operand.vmem [shape: s32[2,64,1], index: 0, kind: input, shape index: {}]
  %s1 = inlined_call_operand.vmem [shape: s32[2,8,1], index: 1, kind: input, shape index: {}]
  %s2 = inlined_call_operand.vmem [shape: f32[24,16], index: 2, kind: input, shape index: {}]
  %s3 = inlined_call_operand.vmem [shape: f32[16,256], index: 3, kind: input, shape index: {}]
  %s4 = inlined_call_operand.vmem [shape: f32[1,256], index: 4, kind: input, shape index: {}]
  %s5 = inlined_call_operand.vmem [shape: f32[2,32,128], index: 5, kind: input, shape index: {}]
  %s6 = inlined_call_operand.hbm [shape: f32[16,64], index: 6, kind: output, shape index: {}]
  %s7 = sld [smem:[#allocation0]]
  $region57: #{tpu_custom_call.1} parent=0
    _
  %s9 = ssub.s32 1, %s7
  %s10 = scalar_select 0, %s9, %s7
  $region1: #{tpu_custom_call.1} parent=0
    #allocation2 [shape = 'u8[8192]{0}', space=vmem, size = 0x2000, scoped, tag = 'output window, operand 0']
    #allocation3 [shape = 's32[2]{0}', space=sflag, size = 0x8, scoped, tag = 'scoped memory for tpu_custom_call.1']
    %11 = vsyncpa [#allocation3], 0
    %s12 = scalar_lea.sflag [#allocation3], 1
    %13 = vsyncpa %s12, 0
    loop: start=0, step=1, limit=4
    $region2: #{tpu_custom_call.1} parent=1 // loop_pre_header
      _
    $region3: #{tpu_custom_call.1} parent=1 // loop_header
      %s15 = sphi 0, %s19
      %p16 = scmp.ge.s32.totalorder %s15, 4
      %s25 = sphi 0, %s27
      %s28 = sphi 0, %s25
      %s29 = sphi 0, %s28
      %s45 = sphi 0, %s29
      %s51 = sphi 0, %s53
      %s54 = sphi 0, %s51
      %s55 = sphi 0, %s54
      %s71 = sphi 0, %s55
      %s75 = sphi 0, %s75
      %s77 = sphi 0, %s75
      %s78 = sphi 0, %s77
      %s92 = sphi 0, %s78
      %s96 = sphi 0, %s96
      %s98 = sphi 0, %s96
      %s99 = sphi 0, %s98
      %s113 = sphi 0, %s99
      %s117 = sphi 0, %s117
      %s119 = sphi 0, %s117
      %s120 = sphi 0, %s119
      %s134 = sphi 0, %s120
      %s138 = sphi 0, %s138
      %s140 = sphi 0, %s138
      %s141 = sphi 0, %s140
      %s155 = sphi 0, %s141
      %s161 = sphi 0, %s163
      %s164 = sphi 0, %s161
      %s165 = sphi 0, %s164
      %s181 = sphi 0, %s165
    $region4: #{tpu_custom_call.1} parent=1 // loop_header_branch
      %18 = sbr.rel (%p16) target = $region8
    $region5: #{tpu_custom_call.1} parent=1 // loop_body
      %s20 = ssub.s32 %s15, 1
      %s21 = ssub.s32 %s15, 2
      %s22 = sadd.s32 %s15, 1
      %s23 = ssub.s32 %s15, %s22
      %p24 = scmp.eq.s32.totalorder %s23, 0
      %s26 = sadd.s32 %s25, 1
      %s27 = scalar_select %p24, %s25, %s26
      %p30 = pneg %p24
      %p31 = scmp.eq.s32.totalorder %s15, 1
      %p32 = por %p30, %p31
      %p33 = scmp.ne.s32.totalorder %s25, %s28
      %p34 = scmp.eq.s32.totalorder %s15, 0
      %p35 = por %p33, %p34
      %p36 = scmp.ne.s32.totalorder %s25, %s28
      %p37 = scmp.eq.s32.totalorder %s20, 1
      %p38 = por %p36, %p37
      %p39 = scmp.ne.s32.totalorder %s28, %s29
      %p40 = scmp.eq.s32.totalorder %s20, 0
      %p41 = por %p39, %p40
      %p42 = scmp.ne.s32.totalorder %s28, %s29
      %p43 = scmp.eq.s32.totalorder %s21, 1
      %p44 = por %p42, %p43
      %p46 = scmp.ne.s32.totalorder %s29, %s45
      %p47 = scmp.eq.s32.totalorder %s21, 0
      %p48 = por %p46, %p47
      %s49 = ssub.s32 %s15, %s22
      %p50 = scmp.eq.s32.totalorder %s49, 0
      %s52 = sadd.s32 %s51, 1
      %s53 = scalar_select %p50, %s51, %s52
      %p56 = pneg %p50
      %p57 = scmp.eq.s32.totalorder %s15, 1
      %p58 = por %p56, %p57
      %p59 = scmp.ne.s32.totalorder %s51, %s54
      %p60 = scmp.eq.s32.totalorder %s15, 0
      %p61 = por %p59, %p60
      %p62 = scmp.ne.s32.totalorder %s51, %s54
      %p63 = scmp.eq.s32.totalorder %s20, 1
      %p64 = por %p62, %p63
      %p65 = scmp.ne.s32.totalorder %s54, %s55
      %p66 = scmp.eq.s32.totalorder %s20, 0
      %p67 = por %p65, %p66
      %p68 = scmp.ne.s32.totalorder %s54, %s55
      %p69 = scmp.eq.s32.totalorder %s21, 1
      %p70 = por %p68, %p69
      %p72 = scmp.ne.s32.totalorder %s55, %s71
      %p73 = scmp.eq.s32.totalorder %s21, 0
      %p74 = por %p72, %p73
      %s76 = sadd.s32 %s75, 1
      %p79 = scmp.eq.s32.totalorder %s15, 1
      %p80 = scmp.ne.s32.totalorder %s75, %s77
      %p81 = scmp.eq.s32.totalorder %s15, 0
      %p82 = por %p80, %p81
      %p83 = scmp.ne.s32.totalorder %s75, %s77
      %p84 = scmp.eq.s32.totalorder %s20, 1
      %p85 = por %p83, %p84
      %p86 = scmp.ne.s32.totalorder %s77, %s78
      %p87 = scmp.eq.s32.totalorder %s20, 0
      %p88 = por %p86, %p87
      %p89 = scmp.ne.s32.totalorder %s77, %s78
      %p90 = scmp.eq.s32.totalorder %s21, 1
      %p91 = por %p89, %p90
      %p93 = scmp.ne.s32.totalorder %s78, %s92
      %p94 = scmp.eq.s32.totalorder %s21, 0
      %p95 = por %p93, %p94
      %s97 = sadd.s32 %s96, 1
      %p100 = scmp.eq.s32.totalorder %s15, 1
      %p101 = scmp.ne.s32.totalorder %s96, %s98
      %p102 = scmp.eq.s32.totalorder %s15, 0
      %p103 = por %p101, %p102
      %p104 = scmp.ne.s32.totalorder %s96, %s98
      %p105 = scmp.eq.s32.totalorder %s20, 1
      %p106 = por %p104, %p105
      %p107 = scmp.ne.s32.totalorder %s98, %s99
      %p108 = scmp.eq.s32.totalorder %s20, 0
      %p109 = por %p107, %p108
      %p110 = scmp.ne.s32.totalorder %s98, %s99
      %p111 = scmp.eq.s32.totalorder %s21, 1
      %p112 = por %p110, %p111
      %p114 = scmp.ne.s32.totalorder %s99, %s113
      %p115 = scmp.eq.s32.totalorder %s21, 0
      %p116 = por %p114, %p115
      %s118 = sadd.s32 %s117, 1
      %p121 = scmp.eq.s32.totalorder %s15, 1
      %p122 = scmp.ne.s32.totalorder %s117, %s119
      %p123 = scmp.eq.s32.totalorder %s15, 0
      %p124 = por %p122, %p123
      %p125 = scmp.ne.s32.totalorder %s117, %s119
      %p126 = scmp.eq.s32.totalorder %s20, 1
      %p127 = por %p125, %p126
      %p128 = scmp.ne.s32.totalorder %s119, %s120
      %p129 = scmp.eq.s32.totalorder %s20, 0
      %p130 = por %p128, %p129
      %p131 = scmp.ne.s32.totalorder %s119, %s120
      %p132 = scmp.eq.s32.totalorder %s21, 1
      %p133 = por %p131, %p132
      %p135 = scmp.ne.s32.totalorder %s120, %s134
      %p136 = scmp.eq.s32.totalorder %s21, 0
      %p137 = por %p135, %p136
      %s139 = sadd.s32 %s138, 1
      %p142 = scmp.eq.s32.totalorder %s15, 1
      %p143 = scmp.ne.s32.totalorder %s138, %s140
      %p144 = scmp.eq.s32.totalorder %s15, 0
      %p145 = por %p143, %p144
      %p146 = scmp.ne.s32.totalorder %s138, %s140
      %p147 = scmp.eq.s32.totalorder %s20, 1
      %p148 = por %p146, %p147
      %p149 = scmp.ne.s32.totalorder %s140, %s141
      %p150 = scmp.eq.s32.totalorder %s20, 0
      %p151 = por %p149, %p150
      %p152 = scmp.ne.s32.totalorder %s140, %s141
      %p153 = scmp.eq.s32.totalorder %s21, 1
      %p154 = por %p152, %p153
      %p156 = scmp.ne.s32.totalorder %s141, %s155
      %p157 = scmp.eq.s32.totalorder %s21, 0
      %p158 = por %p156, %p157
      %s159 = ssub.s32 %s15, %s22
      %p160 = scmp.eq.s32.totalorder %s159, 0
      %s162 = sadd.s32 %s161, 1
      %s163 = scalar_select %p160, %s161, %s162
      %p166 = pneg %p160
      %p167 = scmp.eq.s32.totalorder %s15, 1
      %p168 = por %p166, %p167
      %p169 = scmp.ne.s32.totalorder %s161, %s164
      %p170 = scmp.eq.s32.totalorder %s15, 0
      %p171 = por %p169, %p170
      %p172 = scmp.ne.s32.totalorder %s161, %s164
      %p173 = scmp.eq.s32.totalorder %s20, 1
      %p174 = por %p172, %p173
      %p175 = scmp.ne.s32.totalorder %s164, %s165
      %p176 = scmp.eq.s32.totalorder %s20, 0
      %p177 = por %p175, %p176
      %p178 = scmp.ne.s32.totalorder %s164, %s165
      %p179 = scmp.eq.s32.totalorder %s21, 1
      %p180 = por %p178, %p179
      %p182 = scmp.ne.s32.totalorder %s165, %s181
      %p183 = scmp.eq.s32.totalorder %s21, 0
      %p184 = por %p182, %p183
      %p185 = scmp.le.s32.totalorder 1, %s15
      %p186 = scmp.lt.s32.totalorder %s15, 3
      %p187 = pnand %p185, %p186
      %p188 = pneg %p187
      // Predicated region
      $region9: #{tpu_custom_call.1} parent=5 // pred_check
        _
      $region10: #{tpu_custom_call.1} parent=5 // pred_check_branch
        %190 = sbr.rel (%p187) target = $region12
      $region11: #{tpu_custom_call.1} parent=5 // pred_region
        %s191 = ssub.s32 %s15, 1
        // Predicated region
        $region13: #{tpu_custom_call.1} parent=11 // pred_check
          %p192 = pneg %p88
        $region14: #{tpu_custom_call.1} parent=11 // pred_check_branch
          %194 = sbr.rel (%p192) target = $region16
        $region15: #{tpu_custom_call.1} parent=11 // pred_region
          _
        $region16: #{tpu_custom_call.1} parent=11 // pred_fallthru
          _
        // Predicated region
        $region17: #{tpu_custom_call.1} parent=11 // pred_check
          %p195 = pneg %p109
        $region18: #{tpu_custom_call.1} parent=11 // pred_check_branch
          %197 = sbr.rel (%p195) target = $region20
        $region19: #{tpu_custom_call.1} parent=11 // pred_region
          _
        $region20: #{tpu_custom_call.1} parent=11 // pred_fallthru
          _
        // Predicated region
        $region21: #{tpu_custom_call.1} parent=11 // pred_check
          %p198 = pneg %p130
        $region22: #{tpu_custom_call.1} parent=11 // pred_check_branch
          %200 = sbr.rel (%p198) target = $region24
        $region23: #{tpu_custom_call.1} parent=11 // pred_region
          _
        $region24: #{tpu_custom_call.1} parent=11 // pred_fallthru
          _
        // Predicated region
        $region25: #{tpu_custom_call.1} parent=11 // pred_check
          %p201 = pneg %p151
        $region26: #{tpu_custom_call.1} parent=11 // pred_check_branch
          %203 = sbr.rel (%p201) target = $region28
        $region27: #{tpu_custom_call.1} parent=11 // pred_region
          _
        $region28: #{tpu_custom_call.1} parent=11 // pred_fallthru
          _
      $region12: #{tpu_custom_call.1} parent=5 // pred_fallthru
        _
      %p204 = scmp.lt.s32.totalorder %s15, 2
      // Predicated region
      $region29: #{tpu_custom_call.1} parent=5 // pred_check
        %p205 = pneg %p204
      $region30: #{tpu_custom_call.1} parent=5 // pred_check_branch
        %207 = sbr.rel (%p205) target = $region32
      $region31: #{tpu_custom_call.1} parent=5 // pred_region
        // Predicated region
        $region33: #{tpu_custom_call.1} parent=31 // pred_check
          %p208 = pneg %p35
        $region34: #{tpu_custom_call.1} parent=31 // pred_check_branch
          %210 = sbr.rel (%p208) target = $region36
        $region35: #{tpu_custom_call.1} parent=31 // pred_region
          %p211 = scmp.lt.s32.totalorder %s15, 1
          %s212 = scalar_select %p211, %s15, 1
          %s213 = smul.addr %s212, 8
          %s214 = smul.addr %s213, 8
          %s215 = scalar_lea.vmem %s0, %s214
        $region36: #{tpu_custom_call.1} parent=31 // pred_fallthru
          _
        // Predicated region
        $region37: #{tpu_custom_call.1} parent=31 // pred_check
          %p216 = pneg %p61
        $region38: #{tpu_custom_call.1} parent=31 // pred_check_branch
          %218 = sbr.rel (%p216) target = $region40
        $region39: #{tpu_custom_call.1} parent=31 // pred_region
          %p219 = scmp.lt.s32.totalorder %s15, 1
          %s220 = scalar_select %p219, %s15, 1
          %s221 = smul.addr %s220, 8
          %s222 = scalar_lea.vmem %s1, %s221
        $region40: #{tpu_custom_call.1} parent=31 // pred_fallthru
          _
      $region32: #{tpu_custom_call.1} parent=5 // pred_fallthru
        _
      %p223 = scmp.le.s32.totalorder 1, %s15
      %p224 = scmp.lt.s32.totalorder %s15, 3
      %p225 = pnand %p223, %p224
      %p226 = pneg %p225
      // Predicated region
      $region41: #{tpu_custom_call.1} parent=5 // pred_check
        _
      $region42: #{tpu_custom_call.1} parent=5 // pred_check_branch
        %228 = sbr.rel (%p225) target = $region44
      $region43: #{tpu_custom_call.1} parent=5 // pred_region
        %s229 = ssub.s32 %s15, 1
        %p230 = scmp.lt.s32.totalorder %s20, 1
        %s231 = scalar_select %p230, %s20, 1
        %s232 = smul.addr %s231, 8
        %s233 = smul.addr %s232, 8
        %s234 = scalar_lea.vmem %s0, %s233
        %p235 = pneg %p41
        %p236 = pneg %p38
        %p237 = scmp.lt.s32.totalorder %s20, 1
        %s238 = scalar_select %p237, %s20, 1
        %s239 = smul.addr %s238, 8
        %s240 = scalar_lea.vmem %s1, %s239
        %p241 = pneg %p67
        %p242 = pneg %p64
        %p243 = pneg %p88
        %p244 = pneg %p85
        %p245 = pneg %p109
        %p246 = pneg %p106
        %p247 = pneg %p130
        %p248 = pneg %p127
        %p249 = pneg %p151
        %p250 = pneg %p148
        %p251 = pneg %p177
        %p252 = pneg %p174
        %s253 = sand.u32 %s164, 1
        %s254 = scalar_lea.sflag [#allocation3], %s253
        %s255 = sand.u32 %s164, 1
        %s256 = smul.addr %s255, 8
        %s257 = scalar_lea.vmem [#allocation2], %s256
        %p258 = scmp.lt.s32.totalorder %s20, 1
        %s259 = scalar_select %p258, %s20, 1
        %s260 = smul.addr %s259, 8
        %s261 = smul.addr %s260, 8
        %s262 = scalar_lea.vmem %s0, %s261
        %p263 = scmp.lt.s32.totalorder %s20, 1
        %s264 = scalar_select %p263, %s20, 1
        %s265 = smul.addr %s264, 8
        %s266 = scalar_lea.vmem %s1, %s265
        %v267 = vld [vmem:[%s262] sm:$0xff]
        %v268 = vld [vmem:[%s262 + $0x8] sm:$0xff]
        %v269 = vld [vmem:[%s262 + $0x10] sm:$0xff]
        %v270 = vld [vmem:[%s262 + $0x18] sm:$0xff]
        %v271 = vld [vmem:[%s262 + $0x20] sm:$0xff]
        %v272 = vld [vmem:[%s262 + $0x28] sm:$0xff]
        %v273 = vld [vmem:[%s262 + $0x30] sm:$0xff]
        %v274 = vld [vmem:[%s262 + $0x38] sm:$0xff]
        %v275 = vld [vmem:[%s266] sm:$0xff]
        %v276 = vlaneseq
        %v277 = vand.u32 %v276, 127
        %278 = vset.pattern.permute.xlu0 0
        %279 = vperm.xlu0 %278, %v267
        %v280 = vpop.permute.xlu0 %279
        %281 = vset.pattern.permute.xlu0 0
        %282 = vperm.xlu0 %281, %v268
        %v283 = vpop.permute.xlu0 %282
        %284 = vset.pattern.permute.xlu0 0
        %285 = vperm.xlu0 %284, %v269
        %v286 = vpop.permute.xlu0 %285
        %287 = vset.pattern.permute.xlu0 0
        %288 = vperm.xlu0 %287, %v270
        %v289 = vpop.permute.xlu0 %288
        %290 = vset.pattern.permute.xlu0 0
        %291 = vperm.xlu0 %290, %v271
        %v292 = vpop.permute.xlu0 %291
        %293 = vset.pattern.permute.xlu0 0
        %294 = vperm.xlu0 %293, %v272
        %v295 = vpop.permute.xlu0 %294
        %296 = vset.pattern.permute.xlu0 0
        %297 = vperm.xlu0 %296, %v273
        %v298 = vpop.permute.xlu0 %297
        %299 = vset.pattern.permute.xlu0 0
        %300 = vperm.xlu0 %299, %v274
        %v301 = vpop.permute.xlu0 %300
        %vm302 = vcmp.eq.s32.totalorder %v277, %v280
        %vm303 = vcmp.eq.s32.totalorder %v277, %v283
        %vm304 = vcmp.eq.s32.totalorder %v277, %v286
        %vm305 = vcmp.eq.s32.totalorder %v277, %v289
        %vm306 = vcmp.eq.s32.totalorder %v277, %v292
        %vm307 = vcmp.eq.s32.totalorder %v277, %v295
        %vm308 = vcmp.eq.s32.totalorder %v277, %v298
        %vm309 = vcmp.eq.s32.totalorder %v277, %v301
        %v310 = vsel %vm302, 1, 0
        %v311 = vsel %vm303, 1, 0
        %v312 = vsel %vm304, 1, 0
        %v313 = vsel %vm305, 1, 0
        %v314 = vsel %vm306, 1, 0
        %v315 = vsel %vm307, 1, 0
        %v316 = vsel %vm308, 1, 0
        %v317 = vsel %vm309, 1, 0
        %v318 = vcvt.s32.f32 %v310
        %v319 = vcvt.s32.f32 %v311
        %v320 = vcvt.s32.f32 %v312
        %v321 = vcvt.s32.f32 %v313
        %v322 = vcvt.s32.f32 %v314
        %v323 = vcvt.s32.f32 %v315
        %v324 = vcvt.s32.f32 %v316
        %v325 = vcvt.s32.f32 %v317
        %v326 = vld [vmem:[%s2] sm:$0xff]
        %v327 = vld [vmem:[%s2 + $0x8] sm:$0xff]
        %v328 = vld [vmem:[%s2 + $0x10] sm:$0xff]
        %vm329 = vcmask 195584
        %v331 = vsel %vm329, %v318, 0
        %v334 = vsel %vm329, %v319, 0
        %v337 = vsel %vm329, %v320, 0
        %v340 = vsel %vm329, %v321, 0
        %v343 = vsel %vm329, %v322, 0
        %v346 = vsel %vm329, %v323, 0
        %v349 = vsel %vm329, %v324, 0
        %v352 = vsel %vm329, %v325, 0
        %354 = vmatprep.subr.mxu0 0.0
        %355 = vmatpush1.msra.mxu0 %v326
        %356 = vmatprep.subr.mxu0 0.0
        %357 = vmatpush1.msra.mxu0 %v327
        %358 = vmatprep.subr.mxu0 0.0
        %359 = vmatpush1.msra.mxu0 %v328
        %360 = vmatprep.subr.mxu0 0.0
        %361 = vmatpush1.msra.mxu0 0.0
        %362 = vmatprep.subr.mxu0 0.0
        %363 = vmatpush1.msra.mxu0 0.0
        %364 = vmatprep.subr.mxu0 0.0
        %365 = vmatpush1.msra.mxu0 0.0
        %366 = vmatprep.subr.mxu0 0.0
        %367 = vmatpush1.msra.mxu0 0.0
        %368 = vmatprep.subr.mxu0 0.0
        %369 = vmatpush1.msra.mxu0 0.0
        %370 = vmatprep.subr.mxu0 0.0
        %371 = vmatpush1.msra.mxu0 0.0
        %372 = vmatprep.subr.mxu0 0.0
        %373 = vmatpush1.msra.mxu0 0.0
        %374 = vmatprep.subr.mxu0 0.0
        %375 = vmatpush1.msra.mxu0 0.0
        %376 = vmatprep.subr.mxu0 0.0
        %377 = vmatpush1.msra.mxu0 0.0
        %378 = vmatprep.subr.mxu0 0.0
        %379 = vmatpush1.msra.mxu0 0.0
        %380 = vmatprep.subr.mxu0 0.0
        %381 = vmatpush1.msra.mxu0 0.0
        %382 = vmatprep.subr.mxu0 0.0
        %383 = vmatpush1.msra.mxu0 0.0
        %384 = vmatprep.subr.mxu0 0.0
        %385 = vmatpush1.msra.mxu0 0.0
        %386 = vmatprep.subr.mxu0 0.0
        %387 = vmatpush1.msra.mxu0 0.0
        %388 = vmatprep.subr.mxu0 0.0
        %389 = vmatpush1.msra.mxu0 0.0
        %390 = vmatprep.subr.mxu0 0.0
        %391 = vmatpush1.msra.mxu0 0.0
        %392 = vmatprep.subr.mxu0 0.0
        %393 = vmatpush1.msra.mxu0 0.0
        %394 = vmatprep.subr.mxu0 0.0
        %395 = vmatpush1.msra.mxu0 0.0
        %396 = vmatprep.subr.mxu0 0.0
        %397 = vmatpush1.msra.mxu0 0.0
        %398 = vmatprep.subr.mxu0 0.0
        %399 = vmatpush1.msra.mxu0 0.0
        %400 = vmatprep.subr.mxu0 0.0
        %401 = vmatpush1.msra.mxu0 0.0
        %402 = vmatprep.subr.mxu0 0.0
        %403 = vmatpush1.msra.mxu0 0.0
        %404 = vmatprep.subr.mxu0 0.0
        %405 = vmatpush1.msra.mxu0 0.0
        %406 = vmatprep.subr.mxu0 0.0
        %407 = vmatpush1.msra.mxu0 0.0
        %408 = vmatprep.subr.mxu0 0.0
        %409 = vmatpush1.msra.mxu0 0.0
        %410 = vmatprep.subr.mxu0 0.0
        %411 = vmatpush1.msra.mxu0 0.0
        %412 = vmatprep.subr.mxu0 0.0
        %413 = vmatpush1.msra.mxu0 0.0
        %414 = vmatprep.subr.mxu0 0.0
        %415 = vmatpush1.msra.mxu0 0.0
        %416 = vmatprep.subr.mxu0 0.0
        %417 = vmatpush1.msra.mxu0 0.0
        %418 = vmatprep.mubr.f32.mxu0 0.0
        %419 = vmatmul.mubr.f32.gmra.mrb[0].mxu0 %v331
        %v420 = vpop.f32.mrb[0].mxu0
        %v421 = vadd.f32 0.0, %v420
        %v422 = vpop.f32.mrb[0].mxu0
        %423 = vmatprep.mubr.f32.mxu0 0.0
        %424 = vmatmul.mubr.f32.gmra.mrb[0].mxu0 %v334
        %v425 = vpop.f32.mrb[0].mxu0
        %v426 = vadd.f32 0.0, %v425
        %v427 = vpop.f32.mrb[0].mxu0
        %428 = vmatprep.mubr.f32.mxu0 0.0
        %429 = vmatmul.mubr.f32.gmra.mrb[0].mxu0 %v337
        %v430 = vpop.f32.mrb[0].mxu0
        %v431 = vadd.f32 0.0, %v430
        %v432 = vpop.f32.mrb[0].mxu0
        %433 = vmatprep.mubr.f32.mxu0 0.0
        %434 = vmatmul.mubr.f32.gmra.mrb[0].mxu0 %v340
        %v435 = vpop.f32.mrb[0].mxu0
        %v436 = vadd.f32 0.0, %v435
        %v437 = vpop.f32.mrb[0].mxu0
        %438 = vmatprep.mubr.f32.mxu0 0.0
        %439 = vmatmul.mubr.f32.gmra.mrb[0].mxu0 %v343
        %v440 = vpop.f32.mrb[0].mxu0
        %v441 = vadd.f32 0.0, %v440
        %v442 = vpop.f32.mrb[0].mxu0
        %443 = vmatprep.mubr.f32.mxu0 0.0
        %444 = vmatmul.mubr.f32.gmra.mrb[0].mxu0 %v346
        %v445 = vpop.f32.mrb[0].mxu0
        %v446 = vadd.f32 0.0, %v445
        %v447 = vpop.f32.mrb[0].mxu0
        %448 = vmatprep.mubr.f32.mxu0 0.0
        %449 = vmatmul.mubr.f32.gmra.mrb[0].mxu0 %v349
        %v450 = vpop.f32.mrb[0].mxu0
        %v451 = vadd.f32 0.0, %v450
        %v452 = vpop.f32.mrb[0].mxu0
        %453 = vmatprep.mubr.f32.mxu0 0.0
        %454 = vmatmul.mubr.f32.gmra.mrb[0].mxu0 %v352
        %v455 = vpop.f32.mrb[0].mxu0
        %v456 = vadd.f32 0.0, %v455
        %v457 = vpop.f32.mrb[0].mxu0
        %458 = vdwg.mxu0
        %v459 = vld [vmem:[%s3] sm:$0xff]
        %v460 = vld [vmem:[%s3 + $0x8] sm:$0xff]
        %v461 = vld [vmem:[%s3 + $0x10] sm:$0xff]
        %v462 = vld [vmem:[%s3 + $0x18] sm:$0xff]
        %v463 = vld [vmem:[%s4] sm:$0x3]
        %v465 = vlaneseq
        %v466 = vshrl.u32 %v465, 7
        %v467 = vsub.s32 0, %v466
        %v468 = vrot.slane %v463, %v467
        %v469 = vlaneseq
        %v470 = vshrl.u32 %v469, 7
        %v471 = vsub.s32 1, %v470
        %v472 = vrot.slane %v463, %v471
        %vm475 = vcmask 130048
        %v477 = vsel %vm475, %v421, 0
        %v480 = vsel %vm475, %v426, 0
        %v483 = vsel %vm475, %v431, 0
        %v486 = vsel %vm475, %v436, 0
        %v489 = vsel %vm475, %v441, 0
        %v492 = vsel %vm475, %v446, 0
        %v495 = vsel %vm475, %v451, 0
        %v498 = vsel %vm475, %v456, 0
        %500 = vmatprep.subr.mxu0 %v460
        %501 = vmatpush1.msra.mxu0 %v459
        %502 = vmatprep.subr.mxu0 %v462
        %503 = vmatpush1.msra.mxu0 %v461
        %504 = vmatprep.subr.mxu0 0.0
        %505 = vmatpush1.msra.mxu0 0.0
        %506 = vmatprep.subr.mxu0 0.0
        %507 = vmatpush1.msra.mxu0 0.0
        %508 = vmatprep.subr.mxu0 0.0
        %509 = vmatpush1.msra.mxu0 0.0
        %510 = vmatprep.subr.mxu0 0.0
        %511 = vmatpush1.msra.mxu0 0.0
        %512 = vmatprep.subr.mxu0 0.0
        %513 = vmatpush1.msra.mxu0 0.0
        %514 = vmatprep.subr.mxu0 0.0
        %515 = vmatpush1.msra.mxu0 0.0
        %516 = vmatprep.subr.mxu0 0.0
        %517 = vmatpush1.msra.mxu0 0.0
        %518 = vmatprep.subr.mxu0 0.0
        %519 = vmatpush1.msra.mxu0 0.0
        %520 = vmatprep.subr.mxu0 0.0
        %521 = vmatpush1.msra.mxu0 0.0
        %522 = vmatprep.subr.mxu0 0.0
        %523 = vmatpush1.msra.mxu0 0.0
        %524 = vmatprep.subr.mxu0 0.0
        %525 = vmatpush1.msra.mxu0 0.0
        %526 = vmatprep.subr.mxu0 0.0
        %527 = vmatpush1.msra.mxu0 0.0
        %528 = vmatprep.subr.mxu0 0.0
        %529 = vmatpush1.msra.mxu0 0.0
        %530 = vmatprep.subr.mxu0 0.0
        %531 = vmatpush1.msra.mxu0 0.0
        %532 = vmatprep.subr.mxu0 0.0
        %533 = vmatpush1.msra.mxu0 0.0
        %534 = vmatprep.subr.mxu0 0.0
        %535 = vmatpush1.msra.mxu0 0.0
        %536 = vmatprep.subr.mxu0 0.0
        %537 = vmatpush1.msra.mxu0 0.0
        %538 = vmatprep.subr.mxu0 0.0
        %539 = vmatpush1.msra.mxu0 0.0
        %540 = vmatprep.subr.mxu0 0.0
        %541 = vmatpush1.msra.mxu0 0.0
        %542 = vmatprep.subr.mxu0 0.0
        %543 = vmatpush1.msra.mxu0 0.0
        %544 = vmatprep.subr.mxu0 0.0
        %545 = vmatpush1.msra.mxu0 0.0
        %546 = vmatprep.subr.mxu0 0.0
        %547 = vmatpush1.msra.mxu0 0.0
        %548 = vmatprep.subr.mxu0 0.0
        %549 = vmatpush1.msra.mxu0 0.0
        %550 = vmatprep.subr.mxu0 0.0
        %551 = vmatpush1.msra.mxu0 0.0
        %552 = vmatprep.subr.mxu0 0.0
        %553 = vmatpush1.msra.mxu0 0.0
        %554 = vmatprep.subr.mxu0 0.0
        %555 = vmatpush1.msra.mxu0 0.0
        %556 = vmatprep.subr.mxu0 0.0
        %557 = vmatpush1.msra.mxu0 0.0
        %558 = vmatprep.subr.mxu0 0.0
        %559 = vmatpush1.msra.mxu0 0.0
        %560 = vmatprep.subr.mxu0 0.0
        %561 = vmatpush1.msra.mxu0 0.0
        %562 = vmatprep.subr.mxu0 0.0
        %563 = vmatpush1.msra.mxu0 0.0
        %564 = vmatprep.mubr.f32.mxu0 0.0
        %565 = vmatmul.mubr.f32.gmra.mrb[0].mxu0 %v477
        %v566 = vpop.f32.mrb[0].mxu0
        %v567 = vadd.f32 %v468, %v566
        %v568 = vpop.f32.mrb[0].mxu0
        %v569 = vadd.f32 %v472, %v568
        %570 = vmatprep.mubr.f32.mxu0 0.0
        %571 = vmatmul.mubr.f32.gmra.mrb[0].mxu0 %v480
        %v572 = vpop.f32.mrb[0].mxu0
        %v573 = vadd.f32 %v468, %v572
        %v574 = vpop.f32.mrb[0].mxu0
        %v575 = vadd.f32 %v472, %v574
        %576 = vmatprep.mubr.f32.mxu0 0.0
        %577 = vmatmul.mubr.f32.gmra.mrb[0].mxu0 %v483
        %v578 = vpop.f32.mrb[0].mxu0
        %v579 = vadd.f32 %v468, %v578
        %v580 = vpop.f32.mrb[0].mxu0
        %v581 = vadd.f32 %v472, %v580
        %582 = vmatprep.mubr.f32.mxu0 0.0
        %583 = vmatmul.mubr.f32.gmra.mrb[0].mxu0 %v486
        %v584 = vpop.f32.mrb[0].mxu0
        %v585 = vadd.f32 %v468, %v584
        %v586 = vpop.f32.mrb[0].mxu0
        %v587 = vadd.f32 %v472, %v586
        %588 = vmatprep.mubr.f32.mxu0 0.0
        %589 = vmatmul.mubr.f32.gmra.mrb[0].mxu0 %v489
        %v590 = vpop.f32.mrb[0].mxu0
        %v591 = vadd.f32 %v468, %v590
        %v592 = vpop.f32.mrb[0].mxu0
        %v593 = vadd.f32 %v472, %v592
        %594 = vmatprep.mubr.f32.mxu0 0.0
        %595 = vmatmul.mubr.f32.gmra.mrb[0].mxu0 %v492
        %v596 = vpop.f32.mrb[0].mxu0
        %v597 = vadd.f32 %v468, %v596
        %v598 = vpop.f32.mrb[0].mxu0
        %v599 = vadd.f32 %v472, %v598
        %600 = vmatprep.mubr.f32.mxu0 0.0
        %601 = vmatmul.mubr.f32.gmra.mrb[0].mxu0 %v495
        %v602 = vpop.f32.mrb[0].mxu0
        %v603 = vadd.f32 %v468, %v602
        %v604 = vpop.f32.mrb[0].mxu0
        %v605 = vadd.f32 %v472, %v604
        %606 = vmatprep.mubr.f32.mxu0 0.0
        %607 = vmatmul.mubr.f32.gmra.mrb[0].mxu0 %v498
        %v608 = vpop.f32.mrb[0].mxu0
        %v609 = vadd.f32 %v468, %v608
        %v610 = vpop.f32.mrb[0].mxu0
        %v611 = vadd.f32 %v472, %v610
        %612 = vdwg.mxu0
        %v613 = vld [vmem:[%s5] sm:$0xff]
        %v614 = vld [vmem:[%s5 + $0x8] sm:$0xff]
        %v615 = vld [vmem:[%s5 + $0x10] sm:$0xff]
        %v616 = vld [vmem:[%s5 + $0x18] sm:$0xff]
        %s617 = scalar_lea.vmem %s5, 32
        %v618 = vld [vmem:[%s617] sm:$0xff]
        %v619 = vld [vmem:[%s617 + $0x8] sm:$0xff]
        %v620 = vld [vmem:[%s617 + $0x10] sm:$0xff]
        %v621 = vld [vmem:[%s617 + $0x18] sm:$0xff]
        %vm622 = vcmp.gt.s32.totalorder %v275, 0
        %vm623 = vcmask 261120
        %v625 = vsel %vm623, 0.0, 0
        %627 = vmatprep.subr.mxu0 0.0
        %628 = vmatpush1.msra.mxu0 %v613
        %629 = vmatprep.subr.mxu0 0.0
        %630 = vmatpush1.msra.mxu0 %v614
        %631 = vmatprep.subr.mxu0 0.0
        %632 = vmatpush1.msra.mxu0 %v615
        %633 = vmatprep.subr.mxu0 0.0
        %634 = vmatpush1.msra.mxu0 %v616
        %635 = vmatprep.subr.mxu0 0.0
        %636 = vmatpush1.msra.mxu0 0.0
        %637 = vmatprep.subr.mxu0 0.0
        %638 = vmatpush1.msra.mxu0 0.0
        %639 = vmatprep.subr.mxu0 0.0
        %640 = vmatpush1.msra.mxu0 0.0
        %641 = vmatprep.subr.mxu0 0.0
        %642 = vmatpush1.msra.mxu0 0.0
        %643 = vmatprep.subr.mxu0 0.0
        %644 = vmatpush1.msra.mxu0 0.0
        %645 = vmatprep.subr.mxu0 0.0
        %646 = vmatpush1.msra.mxu0 0.0
        %647 = vmatprep.subr.mxu0 0.0
        %648 = vmatpush1.msra.mxu0 0.0
        %649 = vmatprep.subr.mxu0 0.0
        %650 = vmatpush1.msra.mxu0 0.0
        %651 = vmatprep.subr.mxu0 0.0
        %652 = vmatpush1.msra.mxu0 0.0
        %653 = vmatprep.subr.mxu0 0.0
        %654 = vmatpush1.msra.mxu0 0.0
        %655 = vmatprep.subr.mxu0 0.0
        %656 = vmatpush1.msra.mxu0 0.0
        %657 = vmatprep.subr.mxu0 0.0
        %658 = vmatpush1.msra.mxu0 0.0
        %659 = vmatprep.subr.mxu0 0.0
        %660 = vmatpush1.msra.mxu0 0.0
        %661 = vmatprep.subr.mxu0 0.0
        %662 = vmatpush1.msra.mxu0 0.0
        %663 = vmatprep.subr.mxu0 0.0
        %664 = vmatpush1.msra.mxu0 0.0
        %665 = vmatprep.subr.mxu0 0.0
        %666 = vmatpush1.msra.mxu0 0.0
        %667 = vmatprep.subr.mxu0 0.0
        %668 = vmatpush1.msra.mxu0 0.0
        %669 = vmatprep.subr.mxu0 0.0
        %670 = vmatpush1.msra.mxu0 0.0
        %671 = vmatprep.subr.mxu0 0.0
        %672 = vmatpush1.msra.mxu0 0.0
        %673 = vmatprep.subr.mxu0 0.0
        %674 = vmatpush1.msra.mxu0 0.0
        %675 = vmatprep.subr.mxu0 0.0
        %676 = vmatpush1.msra.mxu0 0.0
        %677 = vmatprep.subr.mxu0 0.0
        %678 = vmatpush1.msra.mxu0 0.0
        %679 = vmatprep.subr.mxu0 0.0
        %680 = vmatpush1.msra.mxu0 0.0
        %681 = vmatprep.subr.mxu0 0.0
        %682 = vmatpush1.msra.mxu0 0.0
        %683 = vmatprep.subr.mxu0 0.0
        %684 = vmatpush1.msra.mxu0 0.0
        %685 = vmatprep.subr.mxu0 0.0
        %686 = vmatpush1.msra.mxu0 0.0
        %687 = vmatprep.subr.mxu0 0.0
        %688 = vmatpush1.msra.mxu0 0.0
        %689 = vmatprep.subr.mxu0 0.0
        %690 = vmatpush1.msra.mxu0 0.0
        %691 = vmatprep.mubr.f32.mxu0 0.0
        %692 = vmatmul.mubr.f32.gmra.mrb[0].mxu0 %v625
        %v693 = vpop.f32.mrb[0].mxu0
        %v694 = vadd.f32 0.0, %v693
        %v695 = vpop.f32.mrb[0].mxu0
        %696 = vdwg.mxu0
        %v697 = vadd.f32 %v567, %v694
        %v698 = vxor.u32 %v697, 2147483648
        %v699 = vmul.f32 %v698, 1.442695
        %v700 = vpow.pop %v699
        %v701 = vadd.f32 %v700, 1.0
        %v702 = vrcp.pop %v701
        %v703 = vmul.f32 1.0, %v702
        %v704 = vtanh.pop %v697
        %v705 = vmul.f32 %v703, 0.0
        %707 = vrot.lane.b32.xlu0 %v704, 32
        %v708 = vpop.permute.xlu0 %707
        %v710 = vmul.f32 %v703, %v708
        %712 = vrot.lane.b32.xlu0 %v710, 32
        %v713 = vpop.permute.xlu0 %712
        %v715 = vadd.f32 %v705, %v713
        %v716 = vtanh.pop %v715
        %718 = vrot.lane.b32.xlu0 %v716, 32
        %v719 = vpop.permute.xlu0 %718
        %v721 = vmul.f32 %v703, %v719
        %v722 = vsel %vm622, 1, 0
        %723 = vset.pattern.permute.xlu0 0
        %724 = vperm.xlu0 %723, %v722
        %v725 = vpop.permute.xlu0 %724
        %vm726 = vcmp.eq.s32.totalorder %v725, 1
        %v727 = vsel %vm726, %v721, 0.0
        %v728 = vsel %vm726, %v715, 0.0
        %vm729 = vcmp.gt.s32.totalorder %v275, 7
        %730 = vmatprep.subr.mxu0 0.0
        %731 = vmatpush1.msra.mxu0 %v618
        %732 = vmatprep.subr.mxu0 0.0
        %733 = vmatpush1.msra.mxu0 %v619
        %734 = vmatprep.subr.mxu0 0.0
        %735 = vmatpush1.msra.mxu0 %v620
        %736 = vmatprep.subr.mxu0 0.0
        %737 = vmatpush1.msra.mxu0 %v621
        %738 = vmatprep.subr.mxu0 0.0
        %739 = vmatpush1.msra.mxu0 0.0
        %740 = vmatprep.subr.mxu0 0.0
        %741 = vmatpush1.msra.mxu0 0.0
        %742 = vmatprep.subr.mxu0 0.0
        %743 = vmatpush1.msra.mxu0 0.0
        %744 = vmatprep.subr.mxu0 0.0
        %745 = vmatpush1.msra.mxu0 0.0
        %746 = vmatprep.subr.mxu0 0.0
        %747 = vmatpush1.msra.mxu0 0.0
        %748 = vmatprep.subr.mxu0 0.0
        %749 = vmatpush1.msra.mxu0 0.0
        %750 = vmatprep.subr.mxu0 0.0
        %751 = vmatpush1.msra.mxu0 0.0
        %752 = vmatprep.subr.mxu0 0.0
        %753 = vmatpush1.msra.mxu0 0.0
        %754 = vmatprep.subr.mxu0 0.0
        %755 = vmatpush1.msra.mxu0 0.0
        %756 = vmatprep.subr.mxu0 0.0
        %757 = vmatpush1.msra.mxu0 0.0
        %758 = vmatprep.subr.mxu0 0.0
        %759 = vmatpush1.msra.mxu0 0.0
        %760 = vmatprep.subr.mxu0 0.0
        %761 = vmatpush1.msra.mxu0 0.0
        %762 = vmatprep.subr.mxu0 0.0
        %763 = vmatpush1.msra.mxu0 0.0
        %764 = vmatprep.subr.mxu0 0.0
        %765 = vmatpush1.msra.mxu0 0.0
        %766 = vmatprep.subr.mxu0 0.0
        %767 = vmatpush1.msra.mxu0 0.0
        %768 = vmatprep.subr.mxu0 0.0
        %769 = vmatpush1.msra.mxu0 0.0
        %770 = vmatprep.subr.mxu0 0.0
        %771 = vmatpush1.msra.mxu0 0.0
        %772 = vmatprep.subr.mxu0 0.0
        %773 = vmatpush1.msra.mxu0 0.0
        %774 = vmatprep.subr.mxu0 0.0
        %775 = vmatpush1.msra.mxu0 0.0
        %776 = vmatprep.subr.mxu0 0.0
        %777 = vmatpush1.msra.mxu0 0.0
        %778 = vmatprep.subr.mxu0 0.0
        %779 = vmatpush1.msra.mxu0 0.0
        %780 = vmatprep.subr.mxu0 0.0
        %781 = vmatpush1.msra.mxu0 0.0
        %782 = vmatprep.subr.mxu0 0.0
        %783 = vmatpush1.msra.mxu0 0.0
        %784 = vmatprep.subr.mxu0 0.0
        %785 = vmatpush1.msra.mxu0 0.0
        %786 = vmatprep.subr.mxu0 0.0
        %787 = vmatpush1.msra.mxu0 0.0
        %788 = vmatprep.subr.mxu0 0.0
        %789 = vmatpush1.msra.mxu0 0.0
        %790 = vmatprep.subr.mxu0 0.0
        %791 = vmatpush1.msra.mxu0 0.0
        %792 = vmatprep.subr.mxu0 0.0
        %793 = vmatpush1.msra.mxu0 0.0
        %794 = vmatprep.mubr.f32.mxu0 0.0
        %795 = vmatmul.mubr.f32.gmra.mrb[0].mxu0 %v625
        %v796 = vpop.f32.mrb[0].mxu0
        %v797 = vadd.f32 0.0, %v796
        %v798 = vpop.f32.mrb[0].mxu0
        %799 = vdwg.mxu0
        %v800 = vadd.f32 %v611, %v797
        %v801 = vxor.u32 %v800, 2147483648
        %v802 = vmul.f32 %v801, 1.442695
        %v803 = vpow.pop %v802
        %v804 = vadd.f32 %v803, 1.0
        %v805 = vrcp.pop %v804
        %v806 = vmul.f32 1.0, %v805
        %v807 = vtanh.pop %v800
        %v808 = vmul.f32 %v806, 0.0
        %810 = vrot.lane.b32.xlu0 %v807, 32
        %v811 = vpop.permute.xlu0 %810
        %v813 = vmul.f32 %v806, %v811
        %815 = vrot.lane.b32.xlu0 %v813, 32
        %v816 = vpop.permute.xlu0 %815
        %v818 = vadd.f32 %v808, %v816
        %v819 = vtanh.pop %v818
        %821 = vrot.lane.b32.xlu0 %v819, 32
        %v822 = vpop.permute.xlu0 %821
        %v824 = vmul.f32 %v806, %v822
        %v825 = vsel %vm729, 1, 0
        %826 = vset.pattern.permute.xlu0 0
        %827 = vperm.xlu0 %826, %v825
        %v828 = vpop.permute.xlu0 %827
        %vm829 = vcmp.eq.s32.totalorder %v828, 1
        %v830 = vsel %vm829, %v824, 0.0
        %v831 = vsel %vm829, %v818, 0.0
        %vm832 = vcmp.gt.s32.totalorder %v275, 1
        %834 = vrot.lane.b32.xlu0 %v727, 64
        %v835 = vpop.permute.xlu0 %834
        %v836 = vsel %vm623, %v835, 0
        %838 = vmatprep.subr.mxu0 0.0
        %839 = vmatpush1.msra.mxu0 %v613
        %840 = vmatprep.subr.mxu0 0.0
        %841 = vmatpush1.msra.mxu0 %v614
        %842 = vmatprep.subr.mxu0 0.0
        %843 = vmatpush1.msra.mxu0 %v615
        %844 = vmatprep.subr.mxu0 0.0
        %845 = vmatpush1.msra.mxu0 %v616
        %846 = vmatprep.subr.mxu0 0.0
        %847 = vmatpush1.msra.mxu0 0.0
        %848 = vmatprep.subr.mxu0 0.0
        %849 = vmatpush1.msra.mxu0 0.0
        %850 = vmatprep.subr.mxu0 0.0
        %851 = vmatpush1.msra.mxu0 0.0
        %852 = vmatprep.subr.mxu0 0.0
        %853 = vmatpush1.msra.mxu0 0.0
        %854 = vmatprep.subr.mxu0 0.0
        %855 = vmatpush1.msra.mxu0 0.0
        %856 = vmatprep.subr.mxu0 0.0
        %857 = vmatpush1.msra.mxu0 0.0
        %858 = vmatprep.subr.mxu0 0.0
        %859 = vmatpush1.msra.mxu0 0.0
        %860 = vmatprep.subr.mxu0 0.0
        %861 = vmatpush1.msra.mxu0 0.0
        %862 = vmatprep.subr.mxu0 0.0
        %863 = vmatpush1.msra.mxu0 0.0
        %864 = vmatprep.subr.mxu0 0.0
        %865 = vmatpush1.msra.mxu0 0.0
        %866 = vmatprep.subr.mxu0 0.0
        %867 = vmatpush1.msra.mxu0 0.0
        %868 = vmatprep.subr.mxu0 0.0
        %869 = vmatpush1.msra.mxu0 0.0
        %870 = vmatprep.subr.mxu0 0.0
        %871 = vmatpush1.msra.mxu0 0.0
        %872 = vmatprep.subr.mxu0 0.0
        %873 = vmatpush1.msra.mxu0 0.0
        %874 = vmatprep.subr.mxu0 0.0
        %875 = vmatpush1.msra.mxu0 0.0
        %876 = vmatprep.subr.mxu0 0.0
        %877 = vmatpush1.msra.mxu0 0.0
        %878 = vmatprep.subr.mxu0 0.0
        %879 = vmatpush1.msra.mxu0 0.0
        %880 = vmatprep.subr.mxu0 0.0
        %881 = vmatpush1.msra.mxu0 0.0
        %882 = vmatprep.subr.mxu0 0.0
        %883 = vmatpush1.msra.mxu0 0.0
        %884 = vmatprep.subr.mxu0 0.0
        %885 = vmatpush1.msra.mxu0 0.0
        %886 = vmatprep.subr.mxu0 0.0
        %887 = vmatpush1.msra.mxu0 0.0
        %888 = vmatprep.subr.mxu0 0.0
        %889 = vmatpush1.msra.mxu0 0.0
        %890 = vmatprep.subr.mxu0 0.0
        %891 = vmatpush1.msra.mxu0 0.0
        %892 = vmatprep.subr.mxu0 0.0
        %893 = vmatpush1.msra.mxu0 0.0
        %894 = vmatprep.subr.mxu0 0.0
        %895 = vmatpush1.msra.mxu0 0.0
        %896 = vmatprep.subr.mxu0 0.0
        %897 = vmatpush1.msra.mxu0 0.0
        %898 = vmatprep.subr.mxu0 0.0
        %899 = vmatpush1.msra.mxu0 0.0
        %900 = vmatprep.subr.mxu0 0.0
        %901 = vmatpush1.msra.mxu0 0.0
        %902 = vmatprep.mubr.f32.mxu0 0.0
        %903 = vmatmul.mubr.f32.gmra.mrb[0].mxu0 %v836
        %v904 = vpop.f32.mrb[0].mxu0
        %v905 = vadd.f32 0.0, %v904
        %v906 = vpop.f32.mrb[0].mxu0
        %907 = vdwg.mxu0
        %v908 = vadd.f32 %v573, %v905
        %v909 = vxor.u32 %v908, 2147483648
        %v910 = vmul.f32 %v909, 1.442695
        %v911 = vpow.pop %v910
        %v912 = vadd.f32 %v911, 1.0
        %v913 = vrcp.pop %v912
        %v914 = vmul.f32 1.0, %v913
        %v915 = vtanh.pop %v908
        %v916 = vmul.f32 %v914, %v728
        %918 = vrot.lane.b32.xlu0 %v915, 32
        %v919 = vpop.permute.xlu0 %918
        %v921 = vmul.f32 %v914, %v919
        %923 = vrot.lane.b32.xlu0 %v921, 32
        %v924 = vpop.permute.xlu0 %923
        %v926 = vadd.f32 %v916, %v924
        %v927 = vtanh.pop %v926
        %929 = vrot.lane.b32.xlu0 %v927, 32
        %v930 = vpop.permute.xlu0 %929
        %v932 = vmul.f32 %v914, %v930
        %v933 = vsel %vm832, 1, 0
        %934 = vset.pattern.permute.xlu0 0
        %935 = vperm.xlu0 %934, %v933
        %v936 = vpop.permute.xlu0 %935
        %vm937 = vcmp.eq.s32.totalorder %v936, 1
        %v938 = vsel %vm937, %v932, %v727
        %v939 = vsel %vm937, %v926, %v728
        %vm940 = vcmp.gt.s32.totalorder %v275, 6
        %942 = vrot.lane.b32.xlu0 %v830, 64
        %v943 = vpop.permute.xlu0 %942
        %v944 = vsel %vm623, %v943, 0
        %946 = vmatprep.subr.mxu0 0.0
        %947 = vmatpush1.msra.mxu0 %v618
        %948 = vmatprep.subr.mxu0 0.0
        %949 = vmatpush1.msra.mxu0 %v619
        %950 = vmatprep.subr.mxu0 0.0
        %951 = vmatpush1.msra.mxu0 %v620
        %952 = vmatprep.subr.mxu0 0.0
        %953 = vmatpush1.msra.mxu0 %v621
        %954 = vmatprep.subr.mxu0 0.0
        %955 = vmatpush1.msra.mxu0 0.0
        %956 = vmatprep.subr.mxu0 0.0
        %957 = vmatpush1.msra.mxu0 0.0
        %958 = vmatprep.subr.mxu0 0.0
        %959 = vmatpush1.msra.mxu0 0.0
        %960 = vmatprep.subr.mxu0 0.0
        %961 = vmatpush1.msra.mxu0 0.0
        %962 = vmatprep.subr.mxu0 0.0
        %963 = vmatpush1.msra.mxu0 0.0
        %964 = vmatprep.subr.mxu0 0.0
        %965 = vmatpush1.msra.mxu0 0.0
        %966 = vmatprep.subr.mxu0 0.0
        %967 = vmatpush1.msra.mxu0 0.0
        %968 = vmatprep.subr.mxu0 0.0
        %969 = vmatpush1.msra.mxu0 0.0
        %970 = vmatprep.subr.mxu0 0.0
        %971 = vmatpush1.msra.mxu0 0.0
        %972 = vmatprep.subr.mxu0 0.0
        %973 = vmatpush1.msra.mxu0 0.0
        %974 = vmatprep.subr.mxu0 0.0
        %975 = vmatpush1.msra.mxu0 0.0
        %976 = vmatprep.subr.mxu0 0.0
        %977 = vmatpush1.msra.mxu0 0.0
        %978 = vmatprep.subr.mxu0 0.0
        %979 = vmatpush1.msra.mxu0 0.0
        %980 = vmatprep.subr.mxu0 0.0
        %981 = vmatpush1.msra.mxu0 0.0
        %982 = vmatprep.subr.mxu0 0.0
        %983 = vmatpush1.msra.mxu0 0.0
        %984 = vmatprep.subr.mxu0 0.0
        %985 = vmatpush1.msra.mxu0 0.0
        %986 = vmatprep.subr.mxu0 0.0
        %987 = vmatpush1.msra.mxu0 0.0
        %988 = vmatprep.subr.mxu0 0.0
        %989 = vmatpush1.msra.mxu0 0.0
        %990 = vmatprep.subr.mxu0 0.0
        %991 = vmatpush1.msra.mxu0 0.0
        %992 = vmatprep.subr.mxu0 0.0
        %993 = vmatpush1.msra.mxu0 0.0
        %994 = vmatprep.subr.mxu0 0.0
        %995 = vmatpush1.msra.mxu0 0.0
        %996 = vmatprep.subr.mxu0 0.0
        %997 = vmatpush1.msra.mxu0 0.0
        %998 = vmatprep.subr.mxu0 0.0
        %999 = vmatpush1.msra.mxu0 0.0
        %1000 = vmatprep.subr.mxu0 0.0
        %1001 = vmatpush1.msra.mxu0 0.0
        %1002 = vmatprep.subr.mxu0 0.0
        %1003 = vmatpush1.msra.mxu0 0.0
        %1004 = vmatprep.subr.mxu0 0.0
        %1005 = vmatpush1.msra.mxu0 0.0
        %1006 = vmatprep.subr.mxu0 0.0
        %1007 = vmatpush1.msra.mxu0 0.0
        %1008 = vmatprep.subr.mxu0 0.0
        %1009 = vmatpush1.msra.mxu0 0.0
        %1010 = vmatprep.mubr.f32.mxu0 0.0
        %1011 = vmatmul.mubr.f32.gmra.mrb[0].mxu0 %v944
        %v1012 = vpop.f32.mrb[0].mxu0
        %v1013 = vadd.f32 0.0, %v1012
        %v1014 = vpop.f32.mrb[0].mxu0
        %1015 = vdwg.mxu0
        %v1016 = vadd.f32 %v605, %v1013
        %v1017 = vxor.u32 %v1016, 2147483648
        %v1018 = vmul.f32 %v1017, 1.442695
        %v1019 = vpow.pop %v1018
        %v1020 = vadd.f32 %v1019, 1.0
        %v1021 = vrcp.pop %v1020
        %v1022 = vmul.f32 1.0, %v1021
        %v1023 = vtanh.pop %v1016
        %v1024 = vmul.f32 %v1022, %v831
        %1026 = vrot.lane.b32.xlu0 %v1023, 32
        %v1027 = vpop.permute.xlu0 %1026
        %v1029 = vmul.f32 %v1022, %v1027
        %1031 = vrot.lane.b32.xlu0 %v1029, 32
        %v1032 = vpop.permute.xlu0 %1031
        %v1034 = vadd.f32 %v1024, %v1032
        %v1035 = vtanh.pop %v1034
        %1037 = vrot.lane.b32.xlu0 %v1035, 32
        %v1038 = vpop.permute.xlu0 %1037
        %v1040 = vmul.f32 %v1022, %v1038
        %v1041 = vsel %vm940, 1, 0
        %1042 = vset.pattern.permute.xlu0 0
        %1043 = vperm.xlu0 %1042, %v1041
        %v1044 = vpop.permute.xlu0 %1043
        %vm1045 = vcmp.eq.s32.totalorder %v1044, 1
        %v1046 = vsel %vm1045, %v1040, %v830
        %v1047 = vsel %vm1045, %v1034, %v831
        %vm1048 = vcmp.gt.s32.totalorder %v275, 2
        %1050 = vrot.lane.b32.xlu0 %v938, 64
        %v1051 = vpop.permute.xlu0 %1050
        %v1052 = vsel %vm623, %v1051, 0
        %1054 = vmatprep.subr.mxu0 0.0
        %1055 = vmatpush1.msra.mxu0 %v613
        %1056 = vmatprep.subr.mxu0 0.0
        %1057 = vmatpush1.msra.mxu0 %v614
        %1058 = vmatprep.subr.mxu0 0.0
        %1059 = vmatpush1.msra.mxu0 %v615
        %1060 = vmatprep.subr.mxu0 0.0
        %1061 = vmatpush1.msra.mxu0 %v616
        %1062 = vmatprep.subr.mxu0 0.0
        %1063 = vmatpush1.msra.mxu0 0.0
        %1064 = vmatprep.subr.mxu0 0.0
        %1065 = vmatpush1.msra.mxu0 0.0
        %1066 = vmatprep.subr.mxu0 0.0
        %1067 = vmatpush1.msra.mxu0 0.0
        %1068 = vmatprep.subr.mxu0 0.0
        %1069 = vmatpush1.msra.mxu0 0.0
        %1070 = vmatprep.subr.mxu0 0.0
        %1071 = vmatpush1.msra.mxu0 0.0
        %1072 = vmatprep.subr.mxu0 0.0
        %1073 = vmatpush1.msra.mxu0 0.0
        %1074 = vmatprep.subr.mxu0 0.0
        %1075 = vmatpush1.msra.mxu0 0.0
        %1076 = vmatprep.subr.mxu0 0.0
        %1077 = vmatpush1.msra.mxu0 0.0
        %1078 = vmatprep.subr.mxu0 0.0
        %1079 = vmatpush1.msra.mxu0 0.0
        %1080 = vmatprep.subr.mxu0 0.0
        %1081 = vmatpush1.msra.mxu0 0.0
        %1082 = vmatprep.subr.mxu0 0.0
        %1083 = vmatpush1.msra.mxu0 0.0
        %1084 = vmatprep.subr.mxu0 0.0
        %1085 = vmatpush1.msra.mxu0 0.0
        %1086 = vmatprep.subr.mxu0 0.0
        %1087 = vmatpush1.msra.mxu0 0.0
        %1088 = vmatprep.subr.mxu0 0.0
        %1089 = vmatpush1.msra.mxu0 0.0
        %1090 = vmatprep.subr.mxu0 0.0
        %1091 = vmatpush1.msra.mxu0 0.0
        %1092 = vmatprep.subr.mxu0 0.0
        %1093 = vmatpush1.msra.mxu0 0.0
        %1094 = vmatprep.subr.mxu0 0.0
        %1095 = vmatpush1.msra.mxu0 0.0
        %1096 = vmatprep.subr.mxu0 0.0
        %1097 = vmatpush1.msra.mxu0 0.0
        %1098 = vmatprep.subr.mxu0 0.0
        %1099 = vmatpush1.msra.mxu0 0.0
        %1100 = vmatprep.subr.mxu0 0.0
        %1101 = vmatpush1.msra.mxu0 0.0
        %1102 = vmatprep.subr.mxu0 0.0
        %1103 = vmatpush1.msra.mxu0 0.0
        %1104 = vmatprep.subr.mxu0 0.0
        %1105 = vmatpush1.msra.mxu0 0.0
        %1106 = vmatprep.subr.mxu0 0.0
        %1107 = vmatpush1.msra.mxu0 0.0
        %1108 = vmatprep.subr.mxu0 0.0
        %1109 = vmatpush1.msra.mxu0 0.0
        %1110 = vmatprep.subr.mxu0 0.0
        %1111 = vmatpush1.msra.mxu0 0.0
        %1112 = vmatprep.subr.mxu0 0.0
        %1113 = vmatpush1.msra.mxu0 0.0
        %1114 = vmatprep.subr.mxu0 0.0
        %1115 = vmatpush1.msra.mxu0 0.0
        %1116 = vmatprep.subr.mxu0 0.0
        %1117 = vmatpush1.msra.mxu0 0.0
        %1118 = vmatprep.mubr.f32.mxu0 0.0
        %1119 = vmatmul.mubr.f32.gmra.mrb[0].mxu0 %v1052
        %v1120 = vpop.f32.mrb[0].mxu0
        %v1121 = vadd.f32 0.0, %v1120
        %v1122 = vpop.f32.mrb[0].mxu0
        %1123 = vdwg.mxu0
        %v1124 = vadd.f32 %v579, %v1121
        %v1125 = vxor.u32 %v1124, 2147483648
        %v1126 = vmul.f32 %v1125, 1.442695
        %v1127 = vpow.pop %v1126
        %v1128 = vadd.f32 %v1127, 1.0
        %v1129 = vrcp.pop %v1128
        %v1130 = vmul.f32 1.0, %v1129
        %v1131 = vtanh.pop %v1124
        %v1132 = vmul.f32 %v1130, %v939
        %1134 = vrot.lane.b32.xlu0 %v1131, 32
        %v1135 = vpop.permute.xlu0 %1134
        %v1137 = vmul.f32 %v1130, %v1135
        %1139 = vrot.lane.b32.xlu0 %v1137, 32
        %v1140 = vpop.permute.xlu0 %1139
        %v1142 = vadd.f32 %v1132, %v1140
        %v1143 = vtanh.pop %v1142
        %1145 = vrot.lane.b32.xlu0 %v1143, 32
        %v1146 = vpop.permute.xlu0 %1145
        %v1148 = vmul.f32 %v1130, %v1146
        %v1149 = vsel %vm1048, 1, 0
        %1150 = vset.pattern.permute.xlu0 0
        %1151 = vperm.xlu0 %1150, %v1149
        %v1152 = vpop.permute.xlu0 %1151
        %vm1153 = vcmp.eq.s32.totalorder %v1152, 1
        %v1154 = vsel %vm1153, %v1148, %v938
        %v1155 = vsel %vm1153, %v1142, %v939
        %vm1156 = vcmp.gt.s32.totalorder %v275, 5
        %1158 = vrot.lane.b32.xlu0 %v1046, 64
        %v1159 = vpop.permute.xlu0 %1158
        %v1160 = vsel %vm623, %v1159, 0
        %1162 = vmatprep.subr.mxu0 0.0
        %1163 = vmatpush1.msra.mxu0 %v618
        %1164 = vmatprep.subr.mxu0 0.0
        %1165 = vmatpush1.msra.mxu0 %v619
        %1166 = vmatprep.subr.mxu0 0.0
        %1167 = vmatpush1.msra.mxu0 %v620
        %1168 = vmatprep.subr.mxu0 0.0
        %1169 = vmatpush1.msra.mxu0 %v621
        %1170 = vmatprep.subr.mxu0 0.0
        %1171 = vmatpush1.msra.mxu0 0.0
        %1172 = vmatprep.subr.mxu0 0.0
        %1173 = vmatpush1.msra.mxu0 0.0
        %1174 = vmatprep.subr.mxu0 0.0
        %1175 = vmatpush1.msra.mxu0 0.0
        %1176 = vmatprep.subr.mxu0 0.0
        %1177 = vmatpush1.msra.mxu0 0.0
        %1178 = vmatprep.subr.mxu0 0.0
        %1179 = vmatpush1.msra.mxu0 0.0
        %1180 = vmatprep.subr.mxu0 0.0
        %1181 = vmatpush1.msra.mxu0 0.0
        %1182 = vmatprep.subr.mxu0 0.0
        %1183 = vmatpush1.msra.mxu0 0.0
        %1184 = vmatprep.subr.mxu0 0.0
        %1185 = vmatpush1.msra.mxu0 0.0
        %1186 = vmatprep.subr.mxu0 0.0
        %1187 = vmatpush1.msra.mxu0 0.0
        %1188 = vmatprep.subr.mxu0 0.0
        %1189 = vmatpush1.msra.mxu0 0.0
        %1190 = vmatprep.subr.mxu0 0.0
        %1191 = vmatpush1.msra.mxu0 0.0
        %1192 = vmatprep.subr.mxu0 0.0
        %1193 = vmatpush1.msra.mxu0 0.0
        %1194 = vmatprep.subr.mxu0 0.0
        %1195 = vmatpush1.msra.mxu0 0.0
        %1196 = vmatprep.subr.mxu0 0.0
        %1197 = vmatpush1.msra.mxu0 0.0
        %1198 = vmatprep.subr.mxu0 0.0
        %1199 = vmatpush1.msra.mxu0 0.0
        %1200 = vmatprep.subr.mxu0 0.0
        %1201 = vmatpush1.msra.mxu0 0.0
        %1202 = vmatprep.subr.mxu0 0.0
        %1203 = vmatpush1.msra.mxu0 0.0
        %1204 = vmatprep.subr.mxu0 0.0
        %1205 = vmatpush1.msra.mxu0 0.0
        %1206 = vmatprep.subr.mxu0 0.0
        %1207 = vmatpush1.msra.mxu0 0.0
        %1208 = vmatprep.subr.mxu0 0.0
        %1209 = vmatpush1.msra.mxu0 0.0
        %1210 = vmatprep.subr.mxu0 0.0
        %1211 = vmatpush1.msra.mxu0 0.0
        %1212 = vmatprep.subr.mxu0 0.0
        %1213 = vmatpush1.msra.mxu0 0.0
        %1214 = vmatprep.subr.mxu0 0.0
        %1215 = vmatpush1.msra.mxu0 0.0
        %1216 = vmatprep.subr.mxu0 0.0
        %1217 = vmatpush1.msra.mxu0 0.0
        %1218 = vmatprep.subr.mxu0 0.0
        %1219 = vmatpush1.msra.mxu0 0.0
        %1220 = vmatprep.subr.mxu0 0.0
        %1221 = vmatpush1.msra.mxu0 0.0
        %1222 = vmatprep.subr.mxu0 0.0
        %1223 = vmatpush1.msra.mxu0 0.0
        %1224 = vmatprep.subr.mxu0 0.0
        %1225 = vmatpush1.msra.mxu0 0.0
        %1226 = vmatprep.mubr.f32.mxu0 0.0
        %1227 = vmatmul.mubr.f32.gmra.mrb[0].mxu0 %v1160
        %v1228 = vpop.f32.mrb[0].mxu0
        %v1229 = vadd.f32 0.0, %v1228
        %v1230 = vpop.f32.mrb[0].mxu0
        %1231 = vdwg.mxu0
        %v1232 = vadd.f32 %v599, %v1229
        %v1233 = vxor.u32 %v1232, 2147483648
        %v1234 = vmul.f32 %v1233, 1.442695
        %v1235 = vpow.pop %v1234
        %v1236 = vadd.f32 %v1235, 1.0
        %v1237 = vrcp.pop %v1236
        %v1238 = vmul.f32 1.0, %v1237
        %v1239 = vtanh.pop %v1232
        %v1240 = vmul.f32 %v1238, %v1047
        %1242 = vrot.lane.b32.xlu0 %v1239, 32
        %v1243 = vpop.permute.xlu0 %1242
        %v1245 = vmul.f32 %v1238, %v1243
        %1247 = vrot.lane.b32.xlu0 %v1245, 32
        %v1248 = vpop.permute.xlu0 %1247
        %v1250 = vadd.f32 %v1240, %v1248
        %v1251 = vtanh.pop %v1250
        %1253 = vrot.lane.b32.xlu0 %v1251, 32
        %v1254 = vpop.permute.xlu0 %1253
        %v1256 = vmul.f32 %v1238, %v1254
        %v1257 = vsel %vm1156, 1, 0
        %1258 = vset.pattern.permute.xlu0 0
        %1259 = vperm.xlu0 %1258, %v1257
        %v1260 = vpop.permute.xlu0 %1259
        %vm1261 = vcmp.eq.s32.totalorder %v1260, 1
        %v1262 = vsel %vm1261, %v1256, %v1046
        %v1263 = vsel %vm1261, %v1250, %v1047
        %vm1264 = vcmp.gt.s32.totalorder %v275, 3
        %1266 = vrot.lane.b32.xlu0 %v1154, 64
        %v1267 = vpop.permute.xlu0 %1266
        %v1268 = vsel %vm623, %v1267, 0
        %1270 = vmatprep.subr.mxu0 0.0
        %1271 = vmatpush1.msra.mxu0 %v613
        %1272 = vmatprep.subr.mxu0 0.0
        %1273 = vmatpush1.msra.mxu0 %v614
        %1274 = vmatprep.subr.mxu0 0.0
        %1275 = vmatpush1.msra.mxu0 %v615
        %1276 = vmatprep.subr.mxu0 0.0
        %1277 = vmatpush1.msra.mxu0 %v616
        %1278 = vmatprep.subr.mxu0 0.0
        %1279 = vmatpush1.msra.mxu0 0.0
        %1280 = vmatprep.subr.mxu0 0.0
        %1281 = vmatpush1.msra.mxu0 0.0
        %1282 = vmatprep.subr.mxu0 0.0
        %1283 = vmatpush1.msra.mxu0 0.0
        %1284 = vmatprep.subr.mxu0 0.0
        %1285 = vmatpush1.msra.mxu0 0.0
        %1286 = vmatprep.subr.mxu0 0.0
        %1287 = vmatpush1.msra.mxu0 0.0
        %1288 = vmatprep.subr.mxu0 0.0
        %1289 = vmatpush1.msra.mxu0 0.0
        %1290 = vmatprep.subr.mxu0 0.0
        %1291 = vmatpush1.msra.mxu0 0.0
        %1292 = vmatprep.subr.mxu0 0.0
        %1293 = vmatpush1.msra.mxu0 0.0
        %1294 = vmatprep.subr.mxu0 0.0
        %1295 = vmatpush1.msra.mxu0 0.0
        %1296 = vmatprep.subr.mxu0 0.0
        %1297 = vmatpush1.msra.mxu0 0.0
        %1298 = vmatprep.subr.mxu0 0.0
        %1299 = vmatpush1.msra.mxu0 0.0
        %1300 = vmatprep.subr.mxu0 0.0
        %1301 = vmatpush1.msra.mxu0 0.0
        %1302 = vmatprep.subr.mxu0 0.0
        %1303 = vmatpush1.msra.mxu0 0.0
        %1304 = vmatprep.subr.mxu0 0.0
        %1305 = vmatpush1.msra.mxu0 0.0
        %1306 = vmatprep.subr.mxu0 0.0
        %1307 = vmatpush1.msra.mxu0 0.0
        %1308 = vmatprep.subr.mxu0 0.0
        %1309 = vmatpush1.msra.mxu0 0.0
        %1310 = vmatprep.subr.mxu0 0.0
        %1311 = vmatpush1.msra.mxu0 0.0
        %1312 = vmatprep.subr.mxu0 0.0
        %1313 = vmatpush1.msra.mxu0 0.0
        %1314 = vmatprep.subr.mxu0 0.0
        %1315 = vmatpush1.msra.mxu0 0.0
        %1316 = vmatprep.subr.mxu0 0.0
        %1317 = vmatpush1.msra.mxu0 0.0
        %1318 = vmatprep.subr.mxu0 0.0
        %1319 = vmatpush1.msra.mxu0 0.0
        %1320 = vmatprep.subr.mxu0 0.0
        %1321 = vmatpush1.msra.mxu0 0.0
        %1322 = vmatprep.subr.mxu0 0.0
        %1323 = vmatpush1.msra.mxu0 0.0
        %1324 = vmatprep.subr.mxu0 0.0
        %1325 = vmatpush1.msra.mxu0 0.0
        %1326 = vmatprep.subr.mxu0 0.0
        %1327 = vmatpush1.msra.mxu0 0.0
        %1328 = vmatprep.subr.mxu0 0.0
        %1329 = vmatpush1.msra.mxu0 0.0
        %1330 = vmatprep.subr.mxu0 0.0
        %1331 = vmatpush1.msra.mxu0 0.0
        %1332 = vmatprep.subr.mxu0 0.0
        %1333 = vmatpush1.msra.mxu0 0.0
        %1334 = vmatprep.mubr.f32.mxu0 0.0
        %1335 = vmatmul.mubr.f32.gmra.mrb[0].mxu0 %v1268
        %v1336 = vpop.f32.mrb[0].mxu0
        %v1337 = vadd.f32 0.0, %v1336
        %v1338 = vpop.f32.mrb[0].mxu0
        %1339 = vdwg.mxu0
        %v1340 = vadd.f32 %v585, %v1337
        %v1341 = vxor.u32 %v1340, 2147483648
        %v1342 = vmul.f32 %v1341, 1.442695
        %v1343 = vpow.pop %v1342
        %v1344 = vadd.f32 %v1343, 1.0
        %v1345 = vrcp.pop %v1344
        %v1346 = vmul.f32 1.0, %v1345
        %v1347 = vtanh.pop %v1340
        %v1348 = vmul.f32 %v1346, %v1155
        %1350 = vrot.lane.b32.xlu0 %v1347, 32
        %v1351 = vpop.permute.xlu0 %1350
        %v1353 = vmul.f32 %v1346, %v1351
        %1355 = vrot.lane.b32.xlu0 %v1353, 32
        %v1356 = vpop.permute.xlu0 %1355
        %v1358 = vadd.f32 %v1348, %v1356
        %v1359 = vtanh.pop %v1358
        %1361 = vrot.lane.b32.xlu0 %v1359, 32
        %v1362 = vpop.permute.xlu0 %1361
        %v1364 = vmul.f32 %v1346, %v1362
        %v1365 = vsel %vm1264, 1, 0
        %1366 = vset.pattern.permute.xlu0 0
        %1367 = vperm.xlu0 %1366, %v1365
        %v1368 = vpop.permute.xlu0 %1367
        %vm1369 = vcmp.eq.s32.totalorder %v1368, 1
        %v1370 = vsel %vm1369, %v1364, %v1154
        %v1371 = vsel %vm1369, %v1358, %v1155
        %vm1372 = vcmp.gt.s32.totalorder %v275, 4
        %1374 = vrot.lane.b32.xlu0 %v1262, 64
        %v1375 = vpop.permute.xlu0 %1374
        %v1376 = vsel %vm623, %v1375, 0
        %1378 = vmatprep.subr.mxu0 0.0
        %1379 = vmatpush1.msra.mxu0 %v618
        %1380 = vmatprep.subr.mxu0 0.0
        %1381 = vmatpush1.msra.mxu0 %v619
        %1382 = vmatprep.subr.mxu0 0.0
        %1383 = vmatpush1.msra.mxu0 %v620
        %1384 = vmatprep.subr.mxu0 0.0
        %1385 = vmatpush1.msra.mxu0 %v621
        %1386 = vmatprep.subr.mxu0 0.0
        %1387 = vmatpush1.msra.mxu0 0.0
        %1388 = vmatprep.subr.mxu0 0.0
        %1389 = vmatpush1.msra.mxu0 0.0
        %1390 = vmatprep.subr.mxu0 0.0
        %1391 = vmatpush1.msra.mxu0 0.0
        %1392 = vmatprep.subr.mxu0 0.0
        %1393 = vmatpush1.msra.mxu0 0.0
        %1394 = vmatprep.subr.mxu0 0.0
        %1395 = vmatpush1.msra.mxu0 0.0
        %1396 = vmatprep.subr.mxu0 0.0
        %1397 = vmatpush1.msra.mxu0 0.0
        %1398 = vmatprep.subr.mxu0 0.0
        %1399 = vmatpush1.msra.mxu0 0.0
        %1400 = vmatprep.subr.mxu0 0.0
        %1401 = vmatpush1.msra.mxu0 0.0
        %1402 = vmatprep.subr.mxu0 0.0
        %1403 = vmatpush1.msra.mxu0 0.0
        %1404 = vmatprep.subr.mxu0 0.0
        %1405 = vmatpush1.msra.mxu0 0.0
        %1406 = vmatprep.subr.mxu0 0.0
        %1407 = vmatpush1.msra.mxu0 0.0
        %1408 = vmatprep.subr.mxu0 0.0
        %1409 = vmatpush1.msra.mxu0 0.0
        %1410 = vmatprep.subr.mxu0 0.0
        %1411 = vmatpush1.msra.mxu0 0.0
        %1412 = vmatprep.subr.mxu0 0.0
        %1413 = vmatpush1.msra.mxu0 0.0
        %1414 = vmatprep.subr.mxu0 0.0
        %1415 = vmatpush1.msra.mxu0 0.0
        %1416 = vmatprep.subr.mxu0 0.0
        %1417 = vmatpush1.msra.mxu0 0.0
        %1418 = vmatprep.subr.mxu0 0.0
        %1419 = vmatpush1.msra.mxu0 0.0
        %1420 = vmatprep.subr.mxu0 0.0
        %1421 = vmatpush1.msra.mxu0 0.0
        %1422 = vmatprep.subr.mxu0 0.0
        %1423 = vmatpush1.msra.mxu0 0.0
        %1424 = vmatprep.subr.mxu0 0.0
        %1425 = vmatpush1.msra.mxu0 0.0
        %1426 = vmatprep.subr.mxu0 0.0
        %1427 = vmatpush1.msra.mxu0 0.0
        %1428 = vmatprep.subr.mxu0 0.0
        %1429 = vmatpush1.msra.mxu0 0.0
        %1430 = vmatprep.subr.mxu0 0.0
        %1431 = vmatpush1.msra.mxu0 0.0
        %1432 = vmatprep.subr.mxu0 0.0
        %1433 = vmatpush1.msra.mxu0 0.0
        %1434 = vmatprep.subr.mxu0 0.0
        %1435 = vmatpush1.msra.mxu0 0.0
        %1436 = vmatprep.subr.mxu0 0.0
        %1437 = vmatpush1.msra.mxu0 0.0
        %1438 = vmatprep.subr.mxu0 0.0
        %1439 = vmatpush1.msra.mxu0 0.0
        %1440 = vmatprep.subr.mxu0 0.0
        %1441 = vmatpush1.msra.mxu0 0.0
        %1442 = vmatprep.mubr.f32.mxu0 0.0
        %1443 = vmatmul.mubr.f32.gmra.mrb[0].mxu0 %v1376
        %v1444 = vpop.f32.mrb[0].mxu0
        %v1445 = vadd.f32 0.0, %v1444
        %v1446 = vpop.f32.mrb[0].mxu0
        %1447 = vdwg.mxu0
        %v1448 = vadd.f32 %v593, %v1445
        %v1449 = vxor.u32 %v1448, 2147483648
        %v1450 = vmul.f32 %v1449, 1.442695
        %v1451 = vpow.pop %v1450
        %v1452 = vadd.f32 %v1451, 1.0
        %v1453 = vrcp.pop %v1452
        %v1454 = vmul.f32 1.0, %v1453
        %v1455 = vtanh.pop %v1448
        %v1456 = vmul.f32 %v1454, %v1263
        %1458 = vrot.lane.b32.xlu0 %v1455, 32
        %v1459 = vpop.permute.xlu0 %1458
        %v1461 = vmul.f32 %v1454, %v1459
        %1463 = vrot.lane.b32.xlu0 %v1461, 32
        %v1464 = vpop.permute.xlu0 %1463
        %v1466 = vadd.f32 %v1456, %v1464
        %v1467 = vtanh.pop %v1466
        %1469 = vrot.lane.b32.xlu0 %v1467, 32
        %v1470 = vpop.permute.xlu0 %1469
        %v1472 = vmul.f32 %v1454, %v1470
        %v1473 = vsel %vm1372, 1, 0
        %1474 = vset.pattern.permute.xlu0 0
        %1475 = vperm.xlu0 %1474, %v1473
        %v1476 = vpop.permute.xlu0 %1475
        %vm1477 = vcmp.eq.s32.totalorder %v1476, 1
        %v1478 = vsel %vm1477, %v1472, %v1262
        %v1479 = vsel %vm1477, %v1466, %v1263
        %1481 = vrot.lane.b32.xlu0 %v1370, 64
        %v1482 = vpop.permute.xlu0 %1481
        %v1483 = vsel %vm623, %v1482, 0
        %1485 = vmatprep.subr.mxu0 0.0
        %1486 = vmatpush1.msra.mxu0 %v613
        %1487 = vmatprep.subr.mxu0 0.0
        %1488 = vmatpush1.msra.mxu0 %v614
        %1489 = vmatprep.subr.mxu0 0.0
        %1490 = vmatpush1.msra.mxu0 %v615
        %1491 = vmatprep.subr.mxu0 0.0
        %1492 = vmatpush1.msra.mxu0 %v616
        %1493 = vmatprep.subr.mxu0 0.0
        %1494 = vmatpush1.msra.mxu0 0.0
        %1495 = vmatprep.subr.mxu0 0.0
        %1496 = vmatpush1.msra.mxu0 0.0
        %1497 = vmatprep.subr.mxu0 0.0
        %1498 = vmatpush1.msra.mxu0 0.0
        %1499 = vmatprep.subr.mxu0 0.0
        %1500 = vmatpush1.msra.mxu0 0.0
        %1501 = vmatprep.subr.mxu0 0.0
        %1502 = vmatpush1.msra.mxu0 0.0
        %1503 = vmatprep.subr.mxu0 0.0
        %1504 = vmatpush1.msra.mxu0 0.0
        %1505 = vmatprep.subr.mxu0 0.0
        %1506 = vmatpush1.msra.mxu0 0.0
        %1507 = vmatprep.subr.mxu0 0.0
        %1508 = vmatpush1.msra.mxu0 0.0
        %1509 = vmatprep.subr.mxu0 0.0
        %1510 = vmatpush1.msra.mxu0 0.0
        %1511 = vmatprep.subr.mxu0 0.0
        %1512 = vmatpush1.msra.mxu0 0.0
        %1513 = vmatprep.subr.mxu0 0.0
        %1514 = vmatpush1.msra.mxu0 0.0
        %1515 = vmatprep.subr.mxu0 0.0
        %1516 = vmatpush1.msra.mxu0 0.0
        %1517 = vmatprep.subr.mxu0 0.0
        %1518 = vmatpush1.msra.mxu0 0.0
        %1519 = vmatprep.subr.mxu0 0.0
        %1520 = vmatpush1.msra.mxu0 0.0
        %1521 = vmatprep.subr.mxu0 0.0
        %1522 = vmatpush1.msra.mxu0 0.0
        %1523 = vmatprep.subr.mxu0 0.0
        %1524 = vmatpush1.msra.mxu0 0.0
        %1525 = vmatprep.subr.mxu0 0.0
        %1526 = vmatpush1.msra.mxu0 0.0
        %1527 = vmatprep.subr.mxu0 0.0
        %1528 = vmatpush1.msra.mxu0 0.0
        %1529 = vmatprep.subr.mxu0 0.0
        %1530 = vmatpush1.msra.mxu0 0.0
        %1531 = vmatprep.subr.mxu0 0.0
        %1532 = vmatpush1.msra.mxu0 0.0
        %1533 = vmatprep.subr.mxu0 0.0
        %1534 = vmatpush1.msra.mxu0 0.0
        %1535 = vmatprep.subr.mxu0 0.0
        %1536 = vmatpush1.msra.mxu0 0.0
        %1537 = vmatprep.subr.mxu0 0.0
        %1538 = vmatpush1.msra.mxu0 0.0
        %1539 = vmatprep.subr.mxu0 0.0
        %1540 = vmatpush1.msra.mxu0 0.0
        %1541 = vmatprep.subr.mxu0 0.0
        %1542 = vmatpush1.msra.mxu0 0.0
        %1543 = vmatprep.subr.mxu0 0.0
        %1544 = vmatpush1.msra.mxu0 0.0
        %1545 = vmatprep.subr.mxu0 0.0
        %1546 = vmatpush1.msra.mxu0 0.0
        %1547 = vmatprep.subr.mxu0 0.0
        %1548 = vmatpush1.msra.mxu0 0.0
        %1549 = vmatprep.mubr.f32.mxu0 0.0
        %1550 = vmatmul.mubr.f32.gmra.mrb[0].mxu0 %v1483
        %v1551 = vpop.f32.mrb[0].mxu0
        %v1552 = vadd.f32 0.0, %v1551
        %v1553 = vpop.f32.mrb[0].mxu0
        %1554 = vdwg.mxu0
        %v1555 = vadd.f32 %v591, %v1552
        %v1556 = vxor.u32 %v1555, 2147483648
        %v1557 = vmul.f32 %v1556, 1.442695
        %v1558 = vpow.pop %v1557
        %v1559 = vadd.f32 %v1558, 1.0
        %v1560 = vrcp.pop %v1559
        %v1561 = vmul.f32 1.0, %v1560
        %v1562 = vtanh.pop %v1555
        %v1563 = vmul.f32 %v1561, %v1371
        %1565 = vrot.lane.b32.xlu0 %v1562, 32
        %v1566 = vpop.permute.xlu0 %1565
        %v1568 = vmul.f32 %v1561, %v1566
        %1570 = vrot.lane.b32.xlu0 %v1568, 32
        %v1571 = vpop.permute.xlu0 %1570
        %v1573 = vadd.f32 %v1563, %v1571
        %v1574 = vtanh.pop %v1573
        %1576 = vrot.lane.b32.xlu0 %v1574, 32
        %v1577 = vpop.permute.xlu0 %1576
        %v1579 = vmul.f32 %v1561, %v1577
        %v1580 = vsel %vm1477, %v1579, %v1370
        %v1581 = vsel %vm1477, %v1573, %v1371
        %1583 = vrot.lane.b32.xlu0 %v1478, 64
        %v1584 = vpop.permute.xlu0 %1583
        %v1585 = vsel %vm623, %v1584, 0
        %1587 = vmatprep.subr.mxu0 0.0
        %1588 = vmatpush1.msra.mxu0 %v618
        %1589 = vmatprep.subr.mxu0 0.0
        %1590 = vmatpush1.msra.mxu0 %v619
        %1591 = vmatprep.subr.mxu0 0.0
        %1592 = vmatpush1.msra.mxu0 %v620
        %1593 = vmatprep.subr.mxu0 0.0
        %1594 = vmatpush1.msra.mxu0 %v621
        %1595 = vmatprep.subr.mxu0 0.0
        %1596 = vmatpush1.msra.mxu0 0.0
        %1597 = vmatprep.subr.mxu0 0.0
        %1598 = vmatpush1.msra.mxu0 0.0
        %1599 = vmatprep.subr.mxu0 0.0
        %1600 = vmatpush1.msra.mxu0 0.0
        %1601 = vmatprep.subr.mxu0 0.0
        %1602 = vmatpush1.msra.mxu0 0.0
        %1603 = vmatprep.subr.mxu0 0.0
        %1604 = vmatpush1.msra.mxu0 0.0
        %1605 = vmatprep.subr.mxu0 0.0
        %1606 = vmatpush1.msra.mxu0 0.0
        %1607 = vmatprep.subr.mxu0 0.0
        %1608 = vmatpush1.msra.mxu0 0.0
        %1609 = vmatprep.subr.mxu0 0.0
        %1610 = vmatpush1.msra.mxu0 0.0
        %1611 = vmatprep.subr.mxu0 0.0
        %1612 = vmatpush1.msra.mxu0 0.0
        %1613 = vmatprep.subr.mxu0 0.0
        %1614 = vmatpush1.msra.mxu0 0.0
        %1615 = vmatprep.subr.mxu0 0.0
        %1616 = vmatpush1.msra.mxu0 0.0
        %1617 = vmatprep.subr.mxu0 0.0
        %1618 = vmatpush1.msra.mxu0 0.0
        %1619 = vmatprep.subr.mxu0 0.0
        %1620 = vmatpush1.msra.mxu0 0.0
        %1621 = vmatprep.subr.mxu0 0.0
        %1622 = vmatpush1.msra.mxu0 0.0
        %1623 = vmatprep.subr.mxu0 0.0
        %1624 = vmatpush1.msra.mxu0 0.0
        %1625 = vmatprep.subr.mxu0 0.0
        %1626 = vmatpush1.msra.mxu0 0.0
        %1627 = vmatprep.subr.mxu0 0.0
        %1628 = vmatpush1.msra.mxu0 0.0
        %1629 = vmatprep.subr.mxu0 0.0
        %1630 = vmatpush1.msra.mxu0 0.0
        %1631 = vmatprep.subr.mxu0 0.0
        %1632 = vmatpush1.msra.mxu0 0.0
        %1633 = vmatprep.subr.mxu0 0.0
        %1634 = vmatpush1.msra.mxu0 0.0
        %1635 = vmatprep.subr.mxu0 0.0
        %1636 = vmatpush1.msra.mxu0 0.0
        %1637 = vmatprep.subr.mxu0 0.0
        %1638 = vmatpush1.msra.mxu0 0.0
        %1639 = vmatprep.subr.mxu0 0.0
        %1640 = vmatpush1.msra.mxu0 0.0
        %1641 = vmatprep.subr.mxu0 0.0
        %1642 = vmatpush1.msra.mxu0 0.0
        %1643 = vmatprep.subr.mxu0 0.0
        %1644 = vmatpush1.msra.mxu0 0.0
        %1645 = vmatprep.subr.mxu0 0.0
        %1646 = vmatpush1.msra.mxu0 0.0
        %1647 = vmatprep.subr.mxu0 0.0
        %1648 = vmatpush1.msra.mxu0 0.0
        %1649 = vmatprep.subr.mxu0 0.0
        %1650 = vmatpush1.msra.mxu0 0.0
        %1651 = vmatprep.mubr.f32.mxu0 0.0
        %1652 = vmatmul.mubr.f32.gmra.mrb[0].mxu0 %v1585
        %v1653 = vpop.f32.mrb[0].mxu0
        %v1654 = vadd.f32 0.0, %v1653
        %v1655 = vpop.f32.mrb[0].mxu0
        %1656 = vdwg.mxu0
        %v1657 = vadd.f32 %v587, %v1654
        %v1658 = vxor.u32 %v1657, 2147483648
        %v1659 = vmul.f32 %v1658, 1.442695
        %v1660 = vpow.pop %v1659
        %v1661 = vadd.f32 %v1660, 1.0
        %v1662 = vrcp.pop %v1661
        %v1663 = vmul.f32 1.0, %v1662
        %v1664 = vtanh.pop %v1657
        %v1665 = vmul.f32 %v1663, %v1479
        %1667 = vrot.lane.b32.xlu0 %v1664, 32
        %v1668 = vpop.permute.xlu0 %1667
        %v1670 = vmul.f32 %v1663, %v1668
        %1672 = vrot.lane.b32.xlu0 %v1670, 32
        %v1673 = vpop.permute.xlu0 %1672
        %v1675 = vadd.f32 %v1665, %v1673
        %v1676 = vtanh.pop %v1675
        %1678 = vrot.lane.b32.xlu0 %v1676, 32
        %v1679 = vpop.permute.xlu0 %1678
        %v1681 = vmul.f32 %v1663, %v1679
        %v1682 = vsel %vm1369, %v1681, %v1478
        %v1683 = vsel %vm1369, %v1675, %v1479
        %1685 = vrot.lane.b32.xlu0 %v1580, 64
        %v1686 = vpop.permute.xlu0 %1685
        %v1687 = vsel %vm623, %v1686, 0
        %1689 = vmatprep.subr.mxu0 0.0
        %1690 = vmatpush1.msra.mxu0 %v613
        %1691 = vmatprep.subr.mxu0 0.0
        %1692 = vmatpush1.msra.mxu0 %v614
        %1693 = vmatprep.subr.mxu0 0.0
        %1694 = vmatpush1.msra.mxu0 %v615
        %1695 = vmatprep.subr.mxu0 0.0
        %1696 = vmatpush1.msra.mxu0 %v616
        %1697 = vmatprep.subr.mxu0 0.0
        %1698 = vmatpush1.msra.mxu0 0.0
        %1699 = vmatprep.subr.mxu0 0.0
        %1700 = vmatpush1.msra.mxu0 0.0
        %1701 = vmatprep.subr.mxu0 0.0
        %1702 = vmatpush1.msra.mxu0 0.0
        %1703 = vmatprep.subr.mxu0 0.0
        %1704 = vmatpush1.msra.mxu0 0.0
        %1705 = vmatprep.subr.mxu0 0.0
        %1706 = vmatpush1.msra.mxu0 0.0
        %1707 = vmatprep.subr.mxu0 0.0
        %1708 = vmatpush1.msra.mxu0 0.0
        %1709 = vmatprep.subr.mxu0 0.0
        %1710 = vmatpush1.msra.mxu0 0.0
        %1711 = vmatprep.subr.mxu0 0.0
        %1712 = vmatpush1.msra.mxu0 0.0
        %1713 = vmatprep.subr.mxu0 0.0
        %1714 = vmatpush1.msra.mxu0 0.0
        %1715 = vmatprep.subr.mxu0 0.0
        %1716 = vmatpush1.msra.mxu0 0.0
        %1717 = vmatprep.subr.mxu0 0.0
        %1718 = vmatpush1.msra.mxu0 0.0
        %1719 = vmatprep.subr.mxu0 0.0
        %1720 = vmatpush1.msra.mxu0 0.0
        %1721 = vmatprep.subr.mxu0 0.0
        %1722 = vmatpush1.msra.mxu0 0.0
        %1723 = vmatprep.subr.mxu0 0.0
        %1724 = vmatpush1.msra.mxu0 0.0
        %1725 = vmatprep.subr.mxu0 0.0
        %1726 = vmatpush1.msra.mxu0 0.0
        %1727 = vmatprep.subr.mxu0 0.0
        %1728 = vmatpush1.msra.mxu0 0.0
        %1729 = vmatprep.subr.mxu0 0.0
        %1730 = vmatpush1.msra.mxu0 0.0
        %1731 = vmatprep.subr.mxu0 0.0
        %1732 = vmatpush1.msra.mxu0 0.0
        %1733 = vmatprep.subr.mxu0 0.0
        %1734 = vmatpush1.msra.mxu0 0.0
        %1735 = vmatprep.subr.mxu0 0.0
        %1736 = vmatpush1.msra.mxu0 0.0
        %1737 = vmatprep.subr.mxu0 0.0
        %1738 = vmatpush1.msra.mxu0 0.0
        %1739 = vmatprep.subr.mxu0 0.0
        %1740 = vmatpush1.msra.mxu0 0.0
        %1741 = vmatprep.subr.mxu0 0.0
        %1742 = vmatpush1.msra.mxu0 0.0
        %1743 = vmatprep.subr.mxu0 0.0
        %1744 = vmatpush1.msra.mxu0 0.0
        %1745 = vmatprep.subr.mxu0 0.0
        %1746 = vmatpush1.msra.mxu0 0.0
        %1747 = vmatprep.subr.mxu0 0.0
        %1748 = vmatpush1.msra.mxu0 0.0
        %1749 = vmatprep.subr.mxu0 0.0
        %1750 = vmatpush1.msra.mxu0 0.0
        %1751 = vmatprep.subr.mxu0 0.0
        %1752 = vmatpush1.msra.mxu0 0.0
        %1753 = vmatprep.mubr.f32.mxu0 0.0
        %1754 = vmatmul.mubr.f32.gmra.mrb[0].mxu0 %v1687
        %v1755 = vpop.f32.mrb[0].mxu0
        %v1756 = vadd.f32 0.0, %v1755
        %v1757 = vpop.f32.mrb[0].mxu0
        %1758 = vdwg.mxu0
        %v1759 = vadd.f32 %v597, %v1756
        %v1760 = vxor.u32 %v1759, 2147483648
        %v1761 = vmul.f32 %v1760, 1.442695
        %v1762 = vpow.pop %v1761
        %v1763 = vadd.f32 %v1762, 1.0
        %v1764 = vrcp.pop %v1763
        %v1765 = vmul.f32 1.0, %v1764
        %v1766 = vtanh.pop %v1759
        %v1767 = vmul.f32 %v1765, %v1581
        %1769 = vrot.lane.b32.xlu0 %v1766, 32
        %v1770 = vpop.permute.xlu0 %1769
        %v1772 = vmul.f32 %v1765, %v1770
        %1774 = vrot.lane.b32.xlu0 %v1772, 32
        %v1775 = vpop.permute.xlu0 %1774
        %v1777 = vadd.f32 %v1767, %v1775
        %v1778 = vtanh.pop %v1777
        %1780 = vrot.lane.b32.xlu0 %v1778, 32
        %v1781 = vpop.permute.xlu0 %1780
        %v1783 = vmul.f32 %v1765, %v1781
        %v1784 = vsel %vm1261, %v1783, %v1580
        %v1785 = vsel %vm1261, %v1777, %v1581
        %1787 = vrot.lane.b32.xlu0 %v1682, 64
        %v1788 = vpop.permute.xlu0 %1787
        %v1789 = vsel %vm623, %v1788, 0
        %1791 = vmatprep.subr.mxu0 0.0
        %1792 = vmatpush1.msra.mxu0 %v618
        %1793 = vmatprep.subr.mxu0 0.0
        %1794 = vmatpush1.msra.mxu0 %v619
        %1795 = vmatprep.subr.mxu0 0.0
        %1796 = vmatpush1.msra.mxu0 %v620
        %1797 = vmatprep.subr.mxu0 0.0
        %1798 = vmatpush1.msra.mxu0 %v621
        %1799 = vmatprep.subr.mxu0 0.0
        %1800 = vmatpush1.msra.mxu0 0.0
        %1801 = vmatprep.subr.mxu0 0.0
        %1802 = vmatpush1.msra.mxu0 0.0
        %1803 = vmatprep.subr.mxu0 0.0
        %1804 = vmatpush1.msra.mxu0 0.0
        %1805 = vmatprep.subr.mxu0 0.0
        %1806 = vmatpush1.msra.mxu0 0.0
        %1807 = vmatprep.subr.mxu0 0.0
        %1808 = vmatpush1.msra.mxu0 0.0
        %1809 = vmatprep.subr.mxu0 0.0
        %1810 = vmatpush1.msra.mxu0 0.0
        %1811 = vmatprep.subr.mxu0 0.0
        %1812 = vmatpush1.msra.mxu0 0.0
        %1813 = vmatprep.subr.mxu0 0.0
        %1814 = vmatpush1.msra.mxu0 0.0
        %1815 = vmatprep.subr.mxu0 0.0
        %1816 = vmatpush1.msra.mxu0 0.0
        %1817 = vmatprep.subr.mxu0 0.0
        %1818 = vmatpush1.msra.mxu0 0.0
        %1819 = vmatprep.subr.mxu0 0.0
        %1820 = vmatpush1.msra.mxu0 0.0
        %1821 = vmatprep.subr.mxu0 0.0
        %1822 = vmatpush1.msra.mxu0 0.0
        %1823 = vmatprep.subr.mxu0 0.0
        %1824 = vmatpush1.msra.mxu0 0.0
        %1825 = vmatprep.subr.mxu0 0.0
        %1826 = vmatpush1.msra.mxu0 0.0
        %1827 = vmatprep.subr.mxu0 0.0
        %1828 = vmatpush1.msra.mxu0 0.0
        %1829 = vmatprep.subr.mxu0 0.0
        %1830 = vmatpush1.msra.mxu0 0.0
        %1831 = vmatprep.subr.mxu0 0.0
        %1832 = vmatpush1.msra.mxu0 0.0
        %1833 = vmatprep.subr.mxu0 0.0
        %1834 = vmatpush1.msra.mxu0 0.0
        %1835 = vmatprep.subr.mxu0 0.0
        %1836 = vmatpush1.msra.mxu0 0.0
        %1837 = vmatprep.subr.mxu0 0.0
        %1838 = vmatpush1.msra.mxu0 0.0
        %1839 = vmatprep.subr.mxu0 0.0
        %1840 = vmatpush1.msra.mxu0 0.0
        %1841 = vmatprep.subr.mxu0 0.0
        %1842 = vmatpush1.msra.mxu0 0.0
        %1843 = vmatprep.subr.mxu0 0.0
        %1844 = vmatpush1.msra.mxu0 0.0
        %1845 = vmatprep.subr.mxu0 0.0
        %1846 = vmatpush1.msra.mxu0 0.0
        %1847 = vmatprep.subr.mxu0 0.0
        %1848 = vmatpush1.msra.mxu0 0.0
        %1849 = vmatprep.subr.mxu0 0.0
        %1850 = vmatpush1.msra.mxu0 0.0
        %1851 = vmatprep.subr.mxu0 0.0
        %1852 = vmatpush1.msra.mxu0 0.0
        %1853 = vmatprep.subr.mxu0 0.0
        %1854 = vmatpush1.msra.mxu0 0.0
        %1855 = vmatprep.mubr.f32.mxu0 0.0
        %1856 = vmatmul.mubr.f32.gmra.mrb[0].mxu0 %v1789
        %v1857 = vpop.f32.mrb[0].mxu0
        %v1858 = vadd.f32 0.0, %v1857
        %v1859 = vpop.f32.mrb[0].mxu0
        %1860 = vdwg.mxu0
        %v1861 = vadd.f32 %v581, %v1858
        %v1862 = vxor.u32 %v1861, 2147483648
        %v1863 = vmul.f32 %v1862, 1.442695
        %v1864 = vpow.pop %v1863
        %v1865 = vadd.f32 %v1864, 1.0
        %v1866 = vrcp.pop %v1865
        %v1867 = vmul.f32 1.0, %v1866
        %v1868 = vtanh.pop %v1861
        %v1869 = vmul.f32 %v1867, %v1683
        %1871 = vrot.lane.b32.xlu0 %v1868, 32
        %v1872 = vpop.permute.xlu0 %1871
        %v1874 = vmul.f32 %v1867, %v1872
        %1876 = vrot.lane.b32.xlu0 %v1874, 32
        %v1877 = vpop.permute.xlu0 %1876
        %v1879 = vadd.f32 %v1869, %v1877
        %v1880 = vtanh.pop %v1879
        %1882 = vrot.lane.b32.xlu0 %v1880, 32
        %v1883 = vpop.permute.xlu0 %1882
        %v1885 = vmul.f32 %v1867, %v1883
        %v1886 = vsel %vm1153, %v1885, %v1682
        %v1887 = vsel %vm1153, %v1879, %v1683
        %1889 = vrot.lane.b32.xlu0 %v1784, 64
        %v1890 = vpop.permute.xlu0 %1889
        %v1891 = vsel %vm623, %v1890, 0
        %1893 = vmatprep.subr.mxu0 0.0
        %1894 = vmatpush1.msra.mxu0 %v613
        %1895 = vmatprep.subr.mxu0 0.0
        %1896 = vmatpush1.msra.mxu0 %v614
        %1897 = vmatprep.subr.mxu0 0.0
        %1898 = vmatpush1.msra.mxu0 %v615
        %1899 = vmatprep.subr.mxu0 0.0
        %1900 = vmatpush1.msra.mxu0 %v616
        %1901 = vmatprep.subr.mxu0 0.0
        %1902 = vmatpush1.msra.mxu0 0.0
        %1903 = vmatprep.subr.mxu0 0.0
        %1904 = vmatpush1.msra.mxu0 0.0
        %1905 = vmatprep.subr.mxu0 0.0
        %1906 = vmatpush1.msra.mxu0 0.0
        %1907 = vmatprep.subr.mxu0 0.0
        %1908 = vmatpush1.msra.mxu0 0.0
        %1909 = vmatprep.subr.mxu0 0.0
        %1910 = vmatpush1.msra.mxu0 0.0
        %1911 = vmatprep.subr.mxu0 0.0
        %1912 = vmatpush1.msra.mxu0 0.0
        %1913 = vmatprep.subr.mxu0 0.0
        %1914 = vmatpush1.msra.mxu0 0.0
        %1915 = vmatprep.subr.mxu0 0.0
        %1916 = vmatpush1.msra.mxu0 0.0
        %1917 = vmatprep.subr.mxu0 0.0
        %1918 = vmatpush1.msra.mxu0 0.0
        %1919 = vmatprep.subr.mxu0 0.0
        %1920 = vmatpush1.msra.mxu0 0.0
        %1921 = vmatprep.subr.mxu0 0.0
        %1922 = vmatpush1.msra.mxu0 0.0
        %1923 = vmatprep.subr.mxu0 0.0
        %1924 = vmatpush1.msra.mxu0 0.0
        %1925 = vmatprep.subr.mxu0 0.0
        %1926 = vmatpush1.msra.mxu0 0.0
        %1927 = vmatprep.subr.mxu0 0.0
        %1928 = vmatpush1.msra.mxu0 0.0
        %1929 = vmatprep.subr.mxu0 0.0
        %1930 = vmatpush1.msra.mxu0 0.0
        %1931 = vmatprep.subr.mxu0 0.0
        %1932 = vmatpush1.msra.mxu0 0.0
        %1933 = vmatprep.subr.mxu0 0.0
        %1934 = vmatpush1.msra.mxu0 0.0
        %1935 = vmatprep.subr.mxu0 0.0
        %1936 = vmatpush1.msra.mxu0 0.0
        %1937 = vmatprep.subr.mxu0 0.0
        %1938 = vmatpush1.msra.mxu0 0.0
        %1939 = vmatprep.subr.mxu0 0.0
        %1940 = vmatpush1.msra.mxu0 0.0
        %1941 = vmatprep.subr.mxu0 0.0
        %1942 = vmatpush1.msra.mxu0 0.0
        %1943 = vmatprep.subr.mxu0 0.0
        %1944 = vmatpush1.msra.mxu0 0.0
        %1945 = vmatprep.subr.mxu0 0.0
        %1946 = vmatpush1.msra.mxu0 0.0
        %1947 = vmatprep.subr.mxu0 0.0
        %1948 = vmatpush1.msra.mxu0 0.0
        %1949 = vmatprep.subr.mxu0 0.0
        %1950 = vmatpush1.msra.mxu0 0.0
        %1951 = vmatprep.subr.mxu0 0.0
        %1952 = vmatpush1.msra.mxu0 0.0
        %1953 = vmatprep.subr.mxu0 0.0
        %1954 = vmatpush1.msra.mxu0 0.0
        %1955 = vmatprep.subr.mxu0 0.0
        %1956 = vmatpush1.msra.mxu0 0.0
        %1957 = vmatprep.mubr.f32.mxu0 0.0
        %1958 = vmatmul.mubr.f32.gmra.mrb[0].mxu0 %v1891
        %v1959 = vpop.f32.mrb[0].mxu0
        %v1960 = vadd.f32 0.0, %v1959
        %v1961 = vpop.f32.mrb[0].mxu0
        %1962 = vdwg.mxu0
        %v1963 = vadd.f32 %v603, %v1960
        %v1964 = vxor.u32 %v1963, 2147483648
        %v1965 = vmul.f32 %v1964, 1.442695
        %v1966 = vpow.pop %v1965
        %v1967 = vadd.f32 %v1966, 1.0
        %v1968 = vrcp.pop %v1967
        %v1969 = vmul.f32 1.0, %v1968
        %v1970 = vtanh.pop %v1963
        %v1971 = vmul.f32 %v1969, %v1785
        %1973 = vrot.lane.b32.xlu0 %v1970, 32
        %v1974 = vpop.permute.xlu0 %1973
        %v1976 = vmul.f32 %v1969, %v1974
        %1978 = vrot.lane.b32.xlu0 %v1976, 32
        %v1979 = vpop.permute.xlu0 %1978
        %v1981 = vadd.f32 %v1971, %v1979
        %v1982 = vtanh.pop %v1981
        %1984 = vrot.lane.b32.xlu0 %v1982, 32
        %v1985 = vpop.permute.xlu0 %1984
        %v1987 = vmul.f32 %v1969, %v1985
        %v1988 = vsel %vm1045, %v1987, %v1784
        %v1989 = vsel %vm1045, %v1981, %v1785
        %1991 = vrot.lane.b32.xlu0 %v1886, 64
        %v1992 = vpop.permute.xlu0 %1991
        %v1993 = vsel %vm623, %v1992, 0
        %1995 = vmatprep.subr.mxu0 0.0
        %1996 = vmatpush1.msra.mxu0 %v618
        %1997 = vmatprep.subr.mxu0 0.0
        %1998 = vmatpush1.msra.mxu0 %v619
        %1999 = vmatprep.subr.mxu0 0.0
        %2000 = vmatpush1.msra.mxu0 %v620
        %2001 = vmatprep.subr.mxu0 0.0
        %2002 = vmatpush1.msra.mxu0 %v621
        %2003 = vmatprep.subr.mxu0 0.0
        %2004 = vmatpush1.msra.mxu0 0.0
        %2005 = vmatprep.subr.mxu0 0.0
        %2006 = vmatpush1.msra.mxu0 0.0
        %2007 = vmatprep.subr.mxu0 0.0
        %2008 = vmatpush1.msra.mxu0 0.0
        %2009 = vmatprep.subr.mxu0 0.0
        %2010 = vmatpush1.msra.mxu0 0.0
        %2011 = vmatprep.subr.mxu0 0.0
        %2012 = vmatpush1.msra.mxu0 0.0
        %2013 = vmatprep.subr.mxu0 0.0
        %2014 = vmatpush1.msra.mxu0 0.0
        %2015 = vmatprep.subr.mxu0 0.0
        %2016 = vmatpush1.msra.mxu0 0.0
        %2017 = vmatprep.subr.mxu0 0.0
        %2018 = vmatpush1.msra.mxu0 0.0
        %2019 = vmatprep.subr.mxu0 0.0
        %2020 = vmatpush1.msra.mxu0 0.0
        %2021 = vmatprep.subr.mxu0 0.0
        %2022 = vmatpush1.msra.mxu0 0.0
        %2023 = vmatprep.subr.mxu0 0.0
        %2024 = vmatpush1.msra.mxu0 0.0
        %2025 = vmatprep.subr.mxu0 0.0
        %2026 = vmatpush1.msra.mxu0 0.0
        %2027 = vmatprep.subr.mxu0 0.0
        %2028 = vmatpush1.msra.mxu0 0.0
        %2029 = vmatprep.subr.mxu0 0.0
        %2030 = vmatpush1.msra.mxu0 0.0
        %2031 = vmatprep.subr.mxu0 0.0
        %2032 = vmatpush1.msra.mxu0 0.0
        %2033 = vmatprep.subr.mxu0 0.0
        %2034 = vmatpush1.msra.mxu0 0.0
        %2035 = vmatprep.subr.mxu0 0.0
        %2036 = vmatpush1.msra.mxu0 0.0
        %2037 = vmatprep.subr.mxu0 0.0
        %2038 = vmatpush1.msra.mxu0 0.0
        %2039 = vmatprep.subr.mxu0 0.0
        %2040 = vmatpush1.msra.mxu0 0.0
        %2041 = vmatprep.subr.mxu0 0.0
        %2042 = vmatpush1.msra.mxu0 0.0
        %2043 = vmatprep.subr.mxu0 0.0
        %2044 = vmatpush1.msra.mxu0 0.0
        %2045 = vmatprep.subr.mxu0 0.0
        %2046 = vmatpush1.msra.mxu0 0.0
        %2047 = vmatprep.subr.mxu0 0.0
        %2048 = vmatpush1.msra.mxu0 0.0
        %2049 = vmatprep.subr.mxu0 0.0
        %2050 = vmatpush1.msra.mxu0 0.0
        %2051 = vmatprep.subr.mxu0 0.0
        %2052 = vmatpush1.msra.mxu0 0.0
        %2053 = vmatprep.subr.mxu0 0.0
        %2054 = vmatpush1.msra.mxu0 0.0
        %2055 = vmatprep.subr.mxu0 0.0
        %2056 = vmatpush1.msra.mxu0 0.0
        %2057 = vmatprep.subr.mxu0 0.0
        %2058 = vmatpush1.msra.mxu0 0.0
        %2059 = vmatprep.mubr.f32.mxu0 0.0
        %2060 = vmatmul.mubr.f32.gmra.mrb[0].mxu0 %v1993
        %v2061 = vpop.f32.mrb[0].mxu0
        %v2062 = vadd.f32 0.0, %v2061
        %v2063 = vpop.f32.mrb[0].mxu0
        %2064 = vdwg.mxu0
        %v2065 = vadd.f32 %v575, %v2062
        %v2066 = vxor.u32 %v2065, 2147483648
        %v2067 = vmul.f32 %v2066, 1.442695
        %v2068 = vpow.pop %v2067
        %v2069 = vadd.f32 %v2068, 1.0
        %v2070 = vrcp.pop %v2069
        %v2071 = vmul.f32 1.0, %v2070
        %v2072 = vtanh.pop %v2065
        %v2073 = vmul.f32 %v2071, %v1887
        %2075 = vrot.lane.b32.xlu0 %v2072, 32
        %v2076 = vpop.permute.xlu0 %2075
        %v2078 = vmul.f32 %v2071, %v2076
        %2080 = vrot.lane.b32.xlu0 %v2078, 32
        %v2081 = vpop.permute.xlu0 %2080
        %v2083 = vadd.f32 %v2073, %v2081
        %v2084 = vtanh.pop %v2083
        %2086 = vrot.lane.b32.xlu0 %v2084, 32
        %v2087 = vpop.permute.xlu0 %2086
        %v2089 = vmul.f32 %v2071, %v2087
        %v2090 = vsel %vm937, %v2089, %v1886
        %v2091 = vsel %vm937, %v2083, %v1887
        %2093 = vrot.lane.b32.xlu0 %v1988, 64
        %v2094 = vpop.permute.xlu0 %2093
        %v2095 = vsel %vm623, %v2094, 0
        %2097 = vmatprep.subr.mxu0 0.0
        %2098 = vmatpush1.msra.mxu0 %v613
        %2099 = vmatprep.subr.mxu0 0.0
        %2100 = vmatpush1.msra.mxu0 %v614
        %2101 = vmatprep.subr.mxu0 0.0
        %2102 = vmatpush1.msra.mxu0 %v615
        %2103 = vmatprep.subr.mxu0 0.0
        %2104 = vmatpush1.msra.mxu0 %v616
        %2105 = vmatprep.subr.mxu0 0.0
        %2106 = vmatpush1.msra.mxu0 0.0
        %2107 = vmatprep.subr.mxu0 0.0
        %2108 = vmatpush1.msra.mxu0 0.0
        %2109 = vmatprep.subr.mxu0 0.0
        %2110 = vmatpush1.msra.mxu0 0.0
        %2111 = vmatprep.subr.mxu0 0.0
        %2112 = vmatpush1.msra.mxu0 0.0
        %2113 = vmatprep.subr.mxu0 0.0
        %2114 = vmatpush1.msra.mxu0 0.0
        %2115 = vmatprep.subr.mxu0 0.0
        %2116 = vmatpush1.msra.mxu0 0.0
        %2117 = vmatprep.subr.mxu0 0.0
        %2118 = vmatpush1.msra.mxu0 0.0
        %2119 = vmatprep.subr.mxu0 0.0
        %2120 = vmatpush1.msra.mxu0 0.0
        %2121 = vmatprep.subr.mxu0 0.0
        %2122 = vmatpush1.msra.mxu0 0.0
        %2123 = vmatprep.subr.mxu0 0.0
        %2124 = vmatpush1.msra.mxu0 0.0
        %2125 = vmatprep.subr.mxu0 0.0
        %2126 = vmatpush1.msra.mxu0 0.0
        %2127 = vmatprep.subr.mxu0 0.0
        %2128 = vmatpush1.msra.mxu0 0.0
        %2129 = vmatprep.subr.mxu0 0.0
        %2130 = vmatpush1.msra.mxu0 0.0
        %2131 = vmatprep.subr.mxu0 0.0
        %2132 = vmatpush1.msra.mxu0 0.0
        %2133 = vmatprep.subr.mxu0 0.0
        %2134 = vmatpush1.msra.mxu0 0.0
        %2135 = vmatprep.subr.mxu0 0.0
        %2136 = vmatpush1.msra.mxu0 0.0
        %2137 = vmatprep.subr.mxu0 0.0
        %2138 = vmatpush1.msra.mxu0 0.0
        %2139 = vmatprep.subr.mxu0 0.0
        %2140 = vmatpush1.msra.mxu0 0.0
        %2141 = vmatprep.subr.mxu0 0.0
        %2142 = vmatpush1.msra.mxu0 0.0
        %2143 = vmatprep.subr.mxu0 0.0
        %2144 = vmatpush1.msra.mxu0 0.0
        %2145 = vmatprep.subr.mxu0 0.0
        %2146 = vmatpush1.msra.mxu0 0.0
        %2147 = vmatprep.subr.mxu0 0.0
        %2148 = vmatpush1.msra.mxu0 0.0
        %2149 = vmatprep.subr.mxu0 0.0
        %2150 = vmatpush1.msra.mxu0 0.0
        %2151 = vmatprep.subr.mxu0 0.0
        %2152 = vmatpush1.msra.mxu0 0.0
        %2153 = vmatprep.subr.mxu0 0.0
        %2154 = vmatpush1.msra.mxu0 0.0
        %2155 = vmatprep.subr.mxu0 0.0
        %2156 = vmatpush1.msra.mxu0 0.0
        %2157 = vmatprep.subr.mxu0 0.0
        %2158 = vmatpush1.msra.mxu0 0.0
        %2159 = vmatprep.subr.mxu0 0.0
        %2160 = vmatpush1.msra.mxu0 0.0
        %2161 = vmatprep.mubr.f32.mxu0 0.0
        %2162 = vmatmul.mubr.f32.gmra.mrb[0].mxu0 %v2095
        %v2163 = vpop.f32.mrb[0].mxu0
        %v2164 = vadd.f32 0.0, %v2163
        %v2165 = vpop.f32.mrb[0].mxu0
        %2166 = vdwg.mxu0
        %v2167 = vadd.f32 %v609, %v2164
        %v2168 = vxor.u32 %v2167, 2147483648
        %v2169 = vmul.f32 %v2168, 1.442695
        %v2170 = vpow.pop %v2169
        %v2171 = vadd.f32 %v2170, 1.0
        %v2172 = vrcp.pop %v2171
        %v2173 = vmul.f32 1.0, %v2172
        %v2174 = vtanh.pop %v2167
        %v2175 = vmul.f32 %v2173, %v1989
        %2177 = vrot.lane.b32.xlu0 %v2174, 32
        %v2178 = vpop.permute.xlu0 %2177
        %v2180 = vmul.f32 %v2173, %v2178
        %2182 = vrot.lane.b32.xlu0 %v2180, 32
        %v2183 = vpop.permute.xlu0 %2182
        %v2185 = vadd.f32 %v2175, %v2183
        %v2186 = vtanh.pop %v2185
        %2188 = vrot.lane.b32.xlu0 %v2186, 32
        %v2189 = vpop.permute.xlu0 %2188
        %v2191 = vmul.f32 %v2173, %v2189
        %v2192 = vsel %vm829, %v2191, %v1988
        %2194 = vrot.lane.b32.xlu0 %v2090, 64
        %v2195 = vpop.permute.xlu0 %2194
        %v2196 = vsel %vm623, %v2195, 0
        %2198 = vmatprep.subr.mxu0 0.0
        %2199 = vmatpush1.msra.mxu0 %v618
        %2200 = vmatprep.subr.mxu0 0.0
        %2201 = vmatpush1.msra.mxu0 %v619
        %2202 = vmatprep.subr.mxu0 0.0
        %2203 = vmatpush1.msra.mxu0 %v620
        %2204 = vmatprep.subr.mxu0 0.0
        %2205 = vmatpush1.msra.mxu0 %v621
        %2206 = vmatprep.subr.mxu0 0.0
        %2207 = vmatpush1.msra.mxu0 0.0
        %2208 = vmatprep.subr.mxu0 0.0
        %2209 = vmatpush1.msra.mxu0 0.0
        %2210 = vmatprep.subr.mxu0 0.0
        %2211 = vmatpush1.msra.mxu0 0.0
        %2212 = vmatprep.subr.mxu0 0.0
        %2213 = vmatpush1.msra.mxu0 0.0
        %2214 = vmatprep.subr.mxu0 0.0
        %2215 = vmatpush1.msra.mxu0 0.0
        %2216 = vmatprep.subr.mxu0 0.0
        %2217 = vmatpush1.msra.mxu0 0.0
        %2218 = vmatprep.subr.mxu0 0.0
        %2219 = vmatpush1.msra.mxu0 0.0
        %2220 = vmatprep.subr.mxu0 0.0
        %2221 = vmatpush1.msra.mxu0 0.0
        %2222 = vmatprep.subr.mxu0 0.0
        %2223 = vmatpush1.msra.mxu0 0.0
        %2224 = vmatprep.subr.mxu0 0.0
        %2225 = vmatpush1.msra.mxu0 0.0
        %2226 = vmatprep.subr.mxu0 0.0
        %2227 = vmatpush1.msra.mxu0 0.0
        %2228 = vmatprep.subr.mxu0 0.0
        %2229 = vmatpush1.msra.mxu0 0.0
        %2230 = vmatprep.subr.mxu0 0.0
        %2231 = vmatpush1.msra.mxu0 0.0
        %2232 = vmatprep.subr.mxu0 0.0
        %2233 = vmatpush1.msra.mxu0 0.0
        %2234 = vmatprep.subr.mxu0 0.0
        %2235 = vmatpush1.msra.mxu0 0.0
        %2236 = vmatprep.subr.mxu0 0.0
        %2237 = vmatpush1.msra.mxu0 0.0
        %2238 = vmatprep.subr.mxu0 0.0
        %2239 = vmatpush1.msra.mxu0 0.0
        %2240 = vmatprep.subr.mxu0 0.0
        %2241 = vmatpush1.msra.mxu0 0.0
        %2242 = vmatprep.subr.mxu0 0.0
        %2243 = vmatpush1.msra.mxu0 0.0
        %2244 = vmatprep.subr.mxu0 0.0
        %2245 = vmatpush1.msra.mxu0 0.0
        %2246 = vmatprep.subr.mxu0 0.0
        %2247 = vmatpush1.msra.mxu0 0.0
        %2248 = vmatprep.subr.mxu0 0.0
        %2249 = vmatpush1.msra.mxu0 0.0
        %2250 = vmatprep.subr.mxu0 0.0
        %2251 = vmatpush1.msra.mxu0 0.0
        %2252 = vmatprep.subr.mxu0 0.0
        %2253 = vmatpush1.msra.mxu0 0.0
        %2254 = vmatprep.subr.mxu0 0.0
        %2255 = vmatpush1.msra.mxu0 0.0
        %2256 = vmatprep.subr.mxu0 0.0
        %2257 = vmatpush1.msra.mxu0 0.0
        %2258 = vmatprep.subr.mxu0 0.0
        %2259 = vmatpush1.msra.mxu0 0.0
        %2260 = vmatprep.subr.mxu0 0.0
        %2261 = vmatpush1.msra.mxu0 0.0
        %2262 = vmatprep.mubr.f32.mxu0 0.0
        %2263 = vmatmul.mubr.f32.gmra.mrb[0].mxu0 %v2196
        %v2264 = vpop.f32.mrb[0].mxu0
        %v2265 = vadd.f32 0.0, %v2264
        %v2266 = vpop.f32.mrb[0].mxu0
        %2267 = vdwg.mxu0
        %v2268 = vadd.f32 %v569, %v2265
        %v2269 = vxor.u32 %v2268, 2147483648
        %v2270 = vmul.f32 %v2269, 1.442695
        %v2271 = vpow.pop %v2270
        %v2272 = vadd.f32 %v2271, 1.0
        %v2273 = vrcp.pop %v2272
        %v2274 = vmul.f32 1.0, %v2273
        %v2275 = vtanh.pop %v2268
        %v2276 = vmul.f32 %v2274, %v2091
        %2278 = vrot.lane.b32.xlu0 %v2275, 32
        %v2279 = vpop.permute.xlu0 %2278
        %v2281 = vmul.f32 %v2274, %v2279
        %2283 = vrot.lane.b32.xlu0 %v2281, 32
        %v2284 = vpop.permute.xlu0 %2283
        %v2286 = vadd.f32 %v2276, %v2284
        %v2287 = vtanh.pop %v2286
        %2289 = vrot.lane.b32.xlu0 %v2287, 32
        %v2290 = vpop.permute.xlu0 %2289
        %v2292 = vmul.f32 %v2274, %v2290
        %v2293 = vsel %vm726, %v2292, %v2090
        %2295 = vrot.lane.b32.xlu0 %v2192, 64
        %v2296 = vpop.permute.xlu0 %2295
        %2299 = vrot.lane.b32.xlu0 %v2293, 96
        %v2300 = vpop.permute.xlu0 %2299
        %v2302 = vsel %vm623, %v2296, %v2300
        %vm2303 = vcmask 523264
        %2304 = vst.msk [vmem:[%s257] sm:$0xff] %vm2303, %v2302
        %s2305 = sand.u32 %s164, 1
        %s2306 = scalar_lea.sflag [#allocation3], %s2305
        %s2307 = sand.u32 %s164, 1
        %s2308 = smul.addr %s2307, 8
        %s2309 = scalar_lea.vmem [#allocation2], %s2308
        // Predicated region
        $region45: #{tpu_custom_call.1} parent=43 // pred_check
          %p2310 = pneg %p174
        $region46: #{tpu_custom_call.1} parent=43 // pred_check_branch
          %2312 = sbr.rel (%p2310) target = $region48
        $region47: #{tpu_custom_call.1} parent=43 // pred_region
          %s2314 = ssub.s32 128, 128
          %2315 = vsyncadd %s2306, %s2314
          %s2316 = smul.addr %s20, 128
          %s2317 = scalar_lea.hbm %s6, %s2316
          %s2319 = sshll.u32 %s2309, 4
          %s2320 = int_to_ptr.vmem [resolvable:$true] %s2319
          %2322 = dma.vmem_to_hbm [thread:$0]  %s2320, 128, %s2317, %s2306
        $region48: #{tpu_custom_call.1} parent=43 // pred_fallthru
          _
      $region44: #{tpu_custom_call.1} parent=5 // pred_fallthru
        _
      %p2323 = scmp.le.s32.totalorder 2, %s15
      // Predicated region
      $region49: #{tpu_custom_call.1} parent=5 // pred_check
        %p2324 = pneg %p2323
      $region50: #{tpu_custom_call.1} parent=5 // pred_check_branch
        %2326 = sbr.rel (%p2324) target = $region52
      $region51: #{tpu_custom_call.1} parent=5 // pred_region
        %s2327 = ssub.s32 %s15, 2
        // Predicated region
        $region53: #{tpu_custom_call.1} parent=51 // pred_check
          %p2328 = pneg %p180
        $region54: #{tpu_custom_call.1} parent=51 // pred_check_branch
          %2330 = sbr.rel (%p2328) target = $region56
        $region55: #{tpu_custom_call.1} parent=51 // pred_region
          %s2331 = sand.u32 %s165, 1
          %s2332 = scalar_lea.sflag [#allocation3], %s2331
          %s2333 = sand.u32 %s165, 1
          %s2334 = smul.addr %s2333, 8
          %s2335 = scalar_lea.vmem [#allocation2], %s2334
          %2336 = dma.done %s2332, 128
        $region56: #{tpu_custom_call.1} parent=51 // pred_fallthru
          _
      $region52: #{tpu_custom_call.1} parent=5 // pred_fallthru
        _
    $region6: #{tpu_custom_call.1} parent=1 // loop_footer
      %s19 = sadd.s32 1, %s15
    $region7: #{tpu_custom_call.1} parent=1 // loop_footer_branch
      %14 = sbr.rel target = $region3
    $region8: #{tpu_custom_call.1} parent=1 // loop_exit
      _
    %2337 = vsyncpa [#allocation3], 1
    %s2338 = scalar_lea.sflag [#allocation3], 1
    %2339 = vsyncpa %s2338, 1

</llo_original>
